<compile_context>
chip_gen: v5e
topology: v5e:2x2
jax: 0.10.0
libtpu: 0.0.40
codegen_flags: <defaults>
</compile_context>

<pallas_src>
import functools

import jax
import jax.numpy as jnp
from jax.experimental import pallas as pl
from jax.experimental.pallas import tpu as pltpu


# ---------------------------- helpers ----------------------------

def _pick_row_tile(m, max_tile=512):
    """Largest row tile <= max_tile that divides m (keeps blocks (8,128)-friendly)."""
    for t in (512, 256, 128, 64, 32, 16, 8):
        if t <= max_tile and m % t == 0:
            return t
    return m


def _compiler_params():
    return pltpu.CompilerParams(dimension_semantics=("parallel",))


# ---------------------------- Pallas kernels ----------------------------

def _qkv_proj_kernel(q_ref, k_ref, v_ref, wq_ref, wk_ref, wv_ref, b_ref, o_ref):
    """Fused Q/K/V projection: one row-tile of tokens -> (tm, 3*H*64) slab."""
    def proj(x_ref, w_ref):
        return jnp.dot(x_ref[...].astype(jnp.bfloat16),
                       w_ref[...].astype(jnp.bfloat16),
                       preferred_element_type=jnp.float32)

    y = jnp.concatenate(
        [proj(q_ref, wq_ref), proj(k_ref, wk_ref), proj(v_ref, wv_ref)], axis=-1)
    o_ref[...] = y + b_ref[...]


def _mha_kernel(qkv_ref, o_ref, *, num_heads, scale):
    """Per-batch multi-head attention over the fused (L, 3*H*64) qkv slab."""
    qkv = qkv_ref[0]                       # (L, 3*HD) f32
    hd = num_heads * 64
    outs = []
    for h in range(num_heads):             # static unroll; lane slices are static
        q = qkv[:, h * 64:(h + 1) * 64] * scale            # pre-scale q (f32)
        k = qkv[:, hd + h * 64: hd + (h + 1) * 64]
        v = qkv[:, 2 * hd + h * 64: 2 * hd + (h + 1) * 64]
        # s = q @ k^T via dot_general (contract head dim), bf16 in / f32 acc
        s = jax.lax.dot_general(
            q.astype(jnp.bfloat16), k.astype(jnp.bfloat16),
            (((1,), (1,)), ((), ())),
            preferred_element_type=jnp.float32)            # (L, L)
        s = s - jnp.max(s, axis=-1, keepdims=True)
        p = jnp.exp(s)
        inv = pl.reciprocal(jnp.sum(p, axis=-1, keepdims=True), approx=True)
        p = p * inv
        o = jnp.dot(p.astype(jnp.bfloat16), v.astype(jnp.bfloat16),
                    preferred_element_type=jnp.float32)    # (L, 64)
        outs.append(o)
    o_ref[0] = jnp.concatenate(outs, axis=-1)              # lane-dense (L, H*64)


def _proj_residual_kernel(x_ref, w_ref, b_ref, r_ref, o_ref):
    """Output projection + bias + residual add fused in one kernel."""
    y = jnp.dot(x_ref[...].astype(jnp.bfloat16),
                w_ref[...].astype(jnp.bfloat16),
                preferred_element_type=jnp.float32)
    o_ref[...] = y + b_ref[...] + r_ref[...]


# ---------------------------- Pallas wrappers ----------------------------

def pallas_qkv_proj(q2d, k2d, v2d, wq, wk, wv, bqkv):
    M, D = q2d.shape
    HD = wq.shape[1]
    tm = _pick_row_tile(M)
    row_spec = pl.BlockSpec((tm, D), lambda i: (i, 0))
    w_spec = pl.BlockSpec((D, HD), lambda i: (0, 0))       # VMEM-resident weights
    b_spec = pl.BlockSpec((1, 3 * HD), lambda i: (0, 0))
    return pl.pallas_call(
        _qkv_proj_kernel,
        out_shape=jax.ShapeDtypeStruct((M, 3 * HD), jnp.float32),
        grid=(M // tm,),
        in_specs=[row_spec, row_spec, row_spec, w_spec, w_spec, w_spec, b_spec],
        out_specs=pl.BlockSpec((tm, 3 * HD), lambda i: (i, 0)),
        compiler_params=_compiler_params(),
    )(q2d, k2d, v2d, wq, wk, wv, bqkv)


def pallas_mha(qkv, num_heads, scale):
    B, L, three_hd = qkv.shape
    HD = num_heads * 64
    return pl.pallas_call(
        functools.partial(_mha_kernel, num_heads=num_heads, scale=scale),
        out_shape=jax.ShapeDtypeStruct((B, L, HD), jnp.float32),
        grid=(B,),
        in_specs=[pl.BlockSpec((1, L, three_hd), lambda b: (b, 0, 0))],
        out_specs=pl.BlockSpec((1, L, HD), lambda b: (b, 0, 0)),
        compiler_params=_compiler_params(),
    )(qkv)


def pallas_proj_residual(x2d, w, b, r2d):
    M, HD = x2d.shape
    D = w.shape[1]
    tm = _pick_row_tile(M)
    return pl.pallas_call(
        _proj_residual_kernel,
        out_shape=jax.ShapeDtypeStruct((M, D), jnp.float32),
        grid=(M // tm,),
        in_specs=[pl.BlockSpec((tm, HD), lambda i: (i, 0)),
                  pl.BlockSpec((HD, D), lambda i: (0, 0)),
                  pl.BlockSpec((1, D), lambda i: (0, 0)),
                  pl.BlockSpec((tm, D), lambda i: (i, 0))],
        out_specs=pl.BlockSpec((tm, D), lambda i: (i, 0)),
        compiler_params=_compiler_params(),
    )(x2d, w, b, r2d)


# ---------------------------- forward ----------------------------

def elastic_mha_forward(params, q, k, v, residual=None, *, num_heads):
    """ElasticMHA.forward (eval mode, mask=None, relative_position=False)."""
    B, Lq, D = q.shape
    # TODO(synk): attention mask and len_q != len_k/len_v are not supported by
    # the fused row-grid layout; the backbone uses self-attention (q=k=v).
    assert k.shape == (B, Lq, D) and v.shape == (B, Lq, D)
    if residual is None:
        residual = q
    HD = num_heads * 64

    qkv = pallas_qkv_proj(q.reshape(-1, D), k.reshape(-1, D), v.reshape(-1, D),
                          params["wq"], params["wk"], params["wv"], params["bqkv"])
    qkv = qkv.reshape(B, Lq, 3 * HD)

    attn_out = pallas_mha(qkv, num_heads=num_heads, scale=64 ** (-0.5))   # (B, L, HD)

    out = pallas_proj_residual(attn_out.reshape(-1, HD),
                               params["wo"], params["bo"],
                               residual.reshape(-1, D))
    return out.reshape(B, Lq, D)


# ---------------------------- parameter init ----------------------------

def init_params(key, embed_dim, num_heads):
    HD = num_heads * 64
    ks = jax.random.split(key, 8)

    def rnd(k, shape, scale=0.05):
        return scale * jax.random.normal(k, shape, jnp.float32)

    wq = rnd(ks[0], (embed_dim, HD))
    wk = rnd(ks[1], (embed_dim, HD))
    wv = rnd(ks[2], (embed_dim, HD))
    bq = rnd(ks[3], (HD,))
    bk = rnd(ks[4], (HD,))
    bv = rnd(ks[5], (HD,))
    wo = rnd(ks[6], (HD, embed_dim))
    bo = rnd(ks[7], (embed_dim,))
    return {
        "wq": wq, "wk": wk, "wv": wv,
        "bqkv": jnp.concatenate([bq, bk, bv]).reshape(1, 3 * HD),
        "wo": wo,
        "bo": bo.reshape(1, embed_dim),
    }


# ---------------------------- main ----------------------------

if __name__ == "__main__":
    B, L, embed_dim, num_heads = 2, 128, 128, 2   # head dim is fixed at 64

    key = jax.random.PRNGKey(0)
    kp, kx = jax.random.split(key)
    params = init_params(kp, embed_dim, num_heads)
    x = jax.random.normal(kx, (B, L, embed_dim), jnp.float32)

    fwd = jax.jit(functools.partial(elastic_mha_forward, num_heads=num_heads))
    out = fwd(params, x, x, x)            # self-attention, residual defaults to q
    jax.block_until_ready(out)

    assert out.shape == (B, L, embed_dim)
    assert bool(jnp.all(jnp.isfinite(out)))
    print("KERNEL_OK")
</pallas_src>

<mosaic_0001>
module attributes {stable_mosaic.version = 11 : i64} {
  func.func @_proj_residual_kernel(%arg0: i32, %arg1: memref<256x128xf32, #tpu.memory_space<vmem>>, %arg2: memref<128x128xf32, #tpu.memory_space<vmem>>, %arg3: memref<1x128xf32, #tpu.memory_space<vmem>>, %arg4: memref<256x128xf32, #tpu.memory_space<vmem>>, %arg5: memref<256x128xf32, #tpu.memory_space<vmem>>) attributes {dimension_semantics = [#tpu.dimension_semantics<parallel>], iteration_bounds = array<i64: 1>, scalar_prefetch = 0 : i64, scratch_operands = 0 : i64, tpu.core_type = #tpu.core_type<tc>, window_params = [{transform_indices = @transform_0, window_bounds = array<i64: 256, 128>}, {pipeline_mode = #tpu.pipeline_mode<synchronous>, transform_indices = @transform_1, window_bounds = array<i64: 128, 128>}, {pipeline_mode = #tpu.pipeline_mode<synchronous>, transform_indices = @transform_2, window_bounds = array<i64: 1, 128>}, {transform_indices = @transform_3, window_bounds = array<i64: 256, 128>}, {transform_indices = @transform_4, window_bounds = array<i64: 256, 128>}]} {
    %c0 = arith.constant 0 : index
    %c0_0 = arith.constant 0 : index
    %0 = vector.load %arg1[%c0, %c0_0] : memref<256x128xf32, #tpu.memory_space<vmem>>, vector<256x128xf32>
    %1 = arith.truncf %0 : vector<256x128xf32> to vector<256x128xbf16>
    %c0_1 = arith.constant 0 : index
    %c0_2 = arith.constant 0 : index
    %2 = vector.load %arg2[%c0_1, %c0_2] : memref<128x128xf32, #tpu.memory_space<vmem>>, vector<128x128xf32>
    %3 = arith.truncf %2 : vector<128x128xf32> to vector<128x128xbf16>
    %cst = arith.constant dense<0.000000e+00> : vector<256x128xf32>
    %4 = tpu.matmul %1, %3, %cst {dimension_numbers = #tpu.dot_dimension_numbers<[1], [0], [0], [1], [0, 0, 1, 1], [], []>} : vector<256x128xbf16>, vector<128x128xbf16>, vector<256x128xf32> -> vector<256x128xf32>
    %c0_3 = arith.constant 0 : index
    %c0_4 = arith.constant 0 : index
    %5 = vector.load %arg3[%c0_3, %c0_4] : memref<1x128xf32, #tpu.memory_space<vmem>>, vector<1x128xf32>
    %6 = vector.broadcast %5 : vector<1x128xf32> to vector<256x128xf32>
    %7 = arith.addf %4, %6 : vector<256x128xf32>
    %c0_5 = arith.constant 0 : index
    %c0_6 = arith.constant 0 : index
    %8 = vector.load %arg4[%c0_5, %c0_6] : memref<256x128xf32, #tpu.memory_space<vmem>>, vector<256x128xf32>
    %9 = arith.addf %7, %8 : vector<256x128xf32>
    %c0_7 = arith.constant 0 : index
    %c0_8 = arith.constant 0 : index
    %10 = vector.load %arg5[%c0_7, %c0_8] : memref<256x128xf32, #tpu.memory_space<vmem>>, vector<256x128xf32>
    tpu.vector_store %arg5[%c0_7, %c0_8], %9 {strides = array<i32>} : memref<256x128xf32, #tpu.memory_space<vmem>>, vector<256x128xf32>,
    return
  }
  func.func @transform_0(%arg0: i32) -> (i32, i32) {
    %c0_i32 = arith.constant 0 : i32
    %c0_i32_0 = arith.constant 0 : i32
    return %arg0, %c0_i32 : i32, i32
  }
  func.func @transform_1(%arg0: i32) -> (i32, i32) {
    %c0_i32 = arith.constant 0 : i32
    %c0_i32_0 = arith.constant 0 : i32
    %c0_i32_1 = arith.constant 0 : i32
    return %c0_i32, %c0_i32_0 : i32, i32
  }
  func.func @transform_2(%arg0: i32) -> (i32, i32) {
    %c0_i32 = arith.constant 0 : i32
    %c0_i32_0 = arith.constant 0 : i32
    %c0_i32_1 = arith.constant 0 : i32
    return %c0_i32, %c0_i32_0 : i32, i32
  }
  func.func @transform_3(%arg0: i32) -> (i32, i32) {
    %c0_i32 = arith.constant 0 : i32
    %c0_i32_0 = arith.constant 0 : i32
    return %arg0, %c0_i32 : i32, i32
  }
  func.func @transform_4(%arg0: i32) -> (i32, i32) {
    %c0_i32 = arith.constant 0 : i32
    %c0_i32_0 = arith.constant 0 : i32
    return %arg0, %c0_i32 : i32, i32
  }
}

module attributes {stable_mosaic.version = 11 : i64} {
  func.func @_mha_kernel(%arg0: i32, %arg1: memref<1x128x384xf32, #tpu.memory_space<vmem>>, %arg2: memref<1x128x128xf32, #tpu.memory_space<vmem>>) attributes {dimension_semantics = [#tpu.dimension_semantics<parallel>], iteration_bounds = array<i64: 2>, scalar_prefetch = 0 : i64, scratch_operands = 0 : i64, tpu.core_type = #tpu.core_type<tc>, window_params = [{transform_indices = @transform_0, window_bounds = array<i64: 1, 128, 384>}, {transform_indices = @transform_1, window_bounds = array<i64: 1, 128, 128>}]} {
    %c0 = arith.constant 0 : index
    %c0_0 = arith.constant 0 : index
    %c0_1 = arith.constant 0 : index
    %0 = vector.load %arg1[%c0, %c0_0, %c0_1] : memref<1x128x384xf32, #tpu.memory_space<vmem>>, vector<1x128x384xf32>
    %1 = vector.shape_cast %0 : vector<1x128x384xf32> to vector<128x384xf32>
    %2 = vector.extract_strided_slice %1 {offsets = [0, 0], sizes = [128, 64], strides = [1, 1]} : vector<128x384xf32> to vector<128x64xf32>
    %cst = arith.constant 1.250000e-01 : f32
    %3 = vector.broadcast %cst : f32 to vector<128x64xf32>
    %4 = arith.mulf %2, %3 : vector<128x64xf32>
    %5 = vector.extract_strided_slice %1 {offsets = [0, 128], sizes = [128, 64], strides = [1, 1]} : vector<128x384xf32> to vector<128x64xf32>
    %6 = vector.extract_strided_slice %1 {offsets = [0, 256], sizes = [128, 64], strides = [1, 1]} : vector<128x384xf32> to vector<128x64xf32>
    %7 = arith.truncf %4 : vector<128x64xf32> to vector<128x64xbf16>
    %8 = arith.truncf %5 : vector<128x64xf32> to vector<128x64xbf16>
    %cst_2 = arith.constant dense<0.000000e+00> : vector<128x128xf32>
    %9 = tpu.matmul %7, %8, %cst_2 {dimension_numbers = #tpu.dot_dimension_numbers<[1], [1], [0], [0], [0, 0, 1, 0], [], []>} : vector<128x64xbf16>, vector<128x64xbf16>, vector<128x128xf32> -> vector<128x128xf32>
    %cst_3 = arith.constant dense<0xFF800000> : vector<128xf32>
    %10 = vector.multi_reduction <maximumf>, %9, %cst_3 [1] : vector<128x128xf32> to vector<128xf32>
    %11 = vector.shape_cast %10 : vector<128xf32> to vector<128x1xf32>
    %12 = vector.broadcast %11 : vector<128x1xf32> to vector<128x128xf32>
    %13 = arith.subf %9, %12 : vector<128x128xf32>
    %14 = math.exp %13 : vector<128x128xf32>
    %cst_4 = arith.constant dense<0.000000e+00> : vector<128xf32>
    %15 = vector.multi_reduction <add>, %14, %cst_4 [1] : vector<128x128xf32> to vector<128xf32>
    %16 = vector.shape_cast %15 : vector<128xf32> to vector<128x1xf32>
    %17 = tpu.reciprocal %16 {approx = true} : vector<128x1xf32> -> vector<128x1xf32>
    %18 = vector.broadcast %17 : vector<128x1xf32> to vector<128x128xf32>
    %19 = arith.mulf %14, %18 : vector<128x128xf32>
    %20 = arith.truncf %19 : vector<128x128xf32> to vector<128x128xbf16>
    %21 = arith.truncf %6 : vector<128x64xf32> to vector<128x64xbf16>
    %cst_5 = arith.constant dense<0.000000e+00> : vector<128x64xf32>
    %22 = tpu.matmul %20, %21, %cst_5 {dimension_numbers = #tpu.dot_dimension_numbers<[1], [0], [0], [1], [0, 0, 1, 1], [], []>} : vector<128x128xbf16>, vector<128x64xbf16>, vector<128x64xf32> -> vector<128x64xf32>
    %23 = vector.extract_strided_slice %1 {offsets = [0, 64], sizes = [128, 64], strides = [1, 1]} : vector<128x384xf32> to vector<128x64xf32>
    %cst_6 = arith.constant 1.250000e-01 : f32
    %24 = vector.broadcast %cst_6 : f32 to vector<128x64xf32>
    %25 = arith.mulf %23, %24 : vector<128x64xf32>
    %26 = vector.extract_strided_slice %1 {offsets = [0, 192], sizes = [128, 64], strides = [1, 1]} : vector<128x384xf32> to vector<128x64xf32>
    %27 = vector.extract_strided_slice %1 {offsets = [0, 320], sizes = [128, 64], strides = [1, 1]} : vector<128x384xf32> to vector<128x64xf32>
    %28 = arith.truncf %25 : vector<128x64xf32> to vector<128x64xbf16>
    %29 = arith.truncf %26 : vector<128x64xf32> to vector<128x64xbf16>
    %cst_7 = arith.constant dense<0.000000e+00> : vector<128x128xf32>
    %30 = tpu.matmul %28, %29, %cst_7 {dimension_numbers = #tpu.dot_dimension_numbers<[1], [1], [0], [0], [0, 0, 1, 0], [], []>} : vector<128x64xbf16>, vector<128x64xbf16>, vector<128x128xf32> -> vector<128x128xf32>
    %cst_8 = arith.constant dense<0xFF800000> : vector<128xf32>
    %31 = vector.multi_reduction <maximumf>, %30, %cst_8 [1] : vector<128x128xf32> to vector<128xf32>
    %32 = vector.shape_cast %31 : vector<128xf32> to vector<128x1xf32>
    %33 = vector.broadcast %32 : vector<128x1xf32> to vector<128x128xf32>
    %34 = arith.subf %30, %33 : vector<128x128xf32>
    %35 = math.exp %34 : vector<128x128xf32>
    %cst_9 = arith.constant dense<0.000000e+00> : vector<128xf32>
    %36 = vector.multi_reduction <add>, %35, %cst_9 [1] : vector<128x128xf32> to vector<128xf32>
    %37 = vector.shape_cast %36 : vector<128xf32> to vector<128x1xf32>
    %38 = tpu.reciprocal %37 {approx = true} : vector<128x1xf32> -> vector<128x1xf32>
    %39 = vector.broadcast %38 : vector<128x1xf32> to vector<128x128xf32>
    %40 = arith.mulf %35, %39 : vector<128x128xf32>
    %41 = arith.truncf %40 : vector<128x128xf32> to vector<128x128xbf16>
    %42 = arith.truncf %27 : vector<128x64xf32> to vector<128x64xbf16>
    %cst_10 = arith.constant dense<0.000000e+00> : vector<128x64xf32>
    %43 = tpu.matmul %41, %42, %cst_10 {dimension_numbers = #tpu.dot_dimension_numbers<[1], [0], [0], [1], [0, 0, 1, 1], [], []>} : vector<128x128xbf16>, vector<128x64xbf16>, vector<128x64xf32> -> vector<128x64xf32>
    %44 = tpu.concatenate %22, %43 in 1 : vector<128x64xf32>, vector<128x64xf32> -> vector<128x128xf32>
    %c0_11 = arith.constant 0 : index
    %c0_12 = arith.constant 0 : index
    %c0_13 = arith.constant 0 : index
    %45 = vector.load %arg2[%c0_11, %c0_12, %c0_13] : memref<1x128x128xf32, #tpu.memory_space<vmem>>, vector<1x128x128xf32>
    %46 = vector.shape_cast %45 : vector<1x128x128xf32> to vector<128x128xf32>
    %47 = vector.shape_cast %44 : vector<128x128xf32> to vector<1x128x128xf32>
    tpu.vector_store %arg2[%c0_11, %c0_12, %c0_13], %47 {strides = array<i32>} : memref<1x128x128xf32, #tpu.memory_space<vmem>>, vector<1x128x128xf32>,
    return
  }
  func.func @transform_0(%arg0: i32) -> (i32, i32, i32) {
    %c0_i32 = arith.constant 0 : i32
    %c0_i32_0 = arith.constant 0 : i32
    %c0_i32_1 = arith.constant 0 : i32
    return %arg0, %c0_i32, %c0_i32_0 : i32, i32, i32
  }
  func.func @transform_1(%arg0: i32) -> (i32, i32, i32) {
    %c0_i32 = arith.constant 0 : i32
    %c0_i32_0 = arith.constant 0 : i32
    %c0_i32_1 = arith.constant 0 : i32
    return %arg0, %c0_i32, %c0_i32_0 : i32, i32, i32
  }
}

module attributes {stable_mosaic.version = 11 : i64} {
  func.func @_qkv_proj_kernel(%arg0: i32, %arg1: memref<256x128xf32, #tpu.memory_space<vmem>>, %arg2: memref<256x128xf32, #tpu.memory_space<vmem>>, %arg3: memref<256x128xf32, #tpu.memory_space<vmem>>, %arg4: memref<128x128xf32, #tpu.memory_space<vmem>>, %arg5: memref<128x128xf32, #tpu.memory_space<vmem>>, %arg6: memref<128x128xf32, #tpu.memory_space<vmem>>, %arg7: memref<1x384xf32, #tpu.memory_space<vmem>>, %arg8: memref<256x384xf32, #tpu.memory_space<vmem>>) attributes {dimension_semantics = [#tpu.dimension_semantics<parallel>], iteration_bounds = array<i64: 1>, scalar_prefetch = 0 : i64, scratch_operands = 0 : i64, tpu.core_type = #tpu.core_type<tc>, window_params = [{transform_indices = @transform_0, window_bounds = array<i64: 256, 128>}, {transform_indices = @transform_1, window_bounds = array<i64: 256, 128>}, {transform_indices = @transform_2, window_bounds = array<i64: 256, 128>}, {pipeline_mode = #tpu.pipeline_mode<synchronous>, transform_indices = @transform_3, window_bounds = array<i64: 128, 128>}, {pipeline_mode = #tpu.pipeline_mode<synchronous>, transform_indices = @transform_4, window_bounds = array<i64: 128, 128>}, {pipeline_mode = #tpu.pipeline_mode<synchronous>, transform_indices = @transform_5, window_bounds = array<i64: 128, 128>}, {pipeline_mode = #tpu.pipeline_mode<synchronous>, transform_indices = @transform_6, window_bounds = array<i64: 1, 384>}, {transform_indices = @transform_7, window_bounds = array<i64: 256, 384>}]} {
    %c0 = arith.constant 0 : index
    %c0_0 = arith.constant 0 : index
    %0 = vector.load %arg1[%c0, %c0_0] : memref<256x128xf32, #tpu.memory_space<vmem>>, vector<256x128xf32>
    %1 = arith.truncf %0 : vector<256x128xf32> to vector<256x128xbf16>
    %c0_1 = arith.constant 0 : index
    %c0_2 = arith.constant 0 : index
    %2 = vector.load %arg4[%c0_1, %c0_2] : memref<128x128xf32, #tpu.memory_space<vmem>>, vector<128x128xf32>
    %3 = arith.truncf %2 : vector<128x128xf32> to vector<128x128xbf16>
    %cst = arith.constant dense<0.000000e+00> : vector<256x128xf32>
    %4 = tpu.matmul %1, %3, %cst {dimension_numbers = #tpu.dot_dimension_numbers<[1], [0], [0], [1], [0, 0, 1, 1], [], []>} : vector<256x128xbf16>, vector<128x128xbf16>, vector<256x128xf32> -> vector<256x128xf32>
    %c0_3 = arith.constant 0 : index
    %c0_4 = arith.constant 0 : index
    %5 = vector.load %arg2[%c0_3, %c0_4] : memref<256x128xf32, #tpu.memory_space<vmem>>, vector<256x128xf32>
    %6 = arith.truncf %5 : vector<256x128xf32> to vector<256x128xbf16>
    %c0_5 = arith.constant 0 : index
    %c0_6 = arith.constant 0 : index
    %7 = vector.load %arg5[%c0_5, %c0_6] : memref<128x128xf32, #tpu.memory_space<vmem>>, vector<128x128xf32>
    %8 = arith.truncf %7 : vector<128x128xf32> to vector<128x128xbf16>
    %cst_7 = arith.constant dense<0.000000e+00> : vector<256x128xf32>
    %9 = tpu.matmul %6, %8, %cst_7 {dimension_numbers = #tpu.dot_dimension_numbers<[1], [0], [0], [1], [0, 0, 1, 1], [], []>} : vector<256x128xbf16>, vector<128x128xbf16>, vector<256x128xf32> -> vector<256x128xf32>
    %c0_8 = arith.constant 0 : index
    %c0_9 = arith.constant 0 : index
    %10 = vector.load %arg3[%c0_8, %c0_9] : memref<256x128xf32, #tpu.memory_space<vmem>>, vector<256x128xf32>
    %11 = arith.truncf %10 : vector<256x128xf32> to vector<256x128xbf16>
    %c0_10 = arith.constant 0 : index
    %c0_11 = arith.constant 0 : index
    %12 = vector.load %arg6[%c0_10, %c0_11] : memref<128x128xf32, #tpu.memory_space<vmem>>, vector<128x128xf32>
    %13 = arith.truncf %12 : vector<128x128xf32> to vector<128x128xbf16>
    %cst_12 = arith.constant dense<0.000000e+00> : vector<256x128xf32>
    %14 = tpu.matmul %11, %13, %cst_12 {dimension_numbers = #tpu.dot_dimension_numbers<[1], [0], [0], [1], [0, 0, 1, 1], [], []>} : vector<256x128xbf16>, vector<128x128xbf16>, vector<256x128xf32> -> vector<256x128xf32>
    %15 = tpu.concatenate %4, %9, %14 in 1 : vector<256x128xf32>, vector<256x128xf32>, vector<256x128xf32> -> vector<256x384xf32>
    %c0_13 = arith.constant 0 : index
    %c0_14 = arith.constant 0 : index
    %16 = vector.load %arg7[%c0_13, %c0_14] : memref<1x384xf32, #tpu.memory_space<vmem>>, vector<1x384xf32>
    %17 = vector.broadcast %16 : vector<1x384xf32> to vector<256x384xf32>
    %18 = arith.addf %15, %17 : vector<256x384xf32>
    %c0_15 = arith.constant 0 : index
    %c0_16 = arith.constant 0 : index
    %19 = vector.load %arg8[%c0_15, %c0_16] : memref<256x384xf32, #tpu.memory_space<vmem>>, vector<256x384xf32>
    tpu.vector_store %arg8[%c0_15, %c0_16], %18 {strides = array<i32>} : memref<256x384xf32, #tpu.memory_space<vmem>>, vector<256x384xf32>,
    return
  }
  func.func @transform_0(%arg0: i32) -> (i32, i32) {
    %c0_i32 = arith.constant 0 : i32
    %c0_i32_0 = arith.constant 0 : i32
    return %arg0, %c0_i32 : i32, i32
  }
  func.func @transform_1(%arg0: i32) -> (i32, i32) {
    %c0_i32 = arith.constant 0 : i32
    %c0_i32_0 = arith.constant 0 : i32
    return %arg0, %c0_i32 : i32, i32
  }
  func.func @transform_2(%arg0: i32) -> (i32, i32) {
    %c0_i32 = arith.constant 0 : i32
    %c0_i32_0 = arith.constant 0 : i32
    return %arg0, %c0_i32 : i32, i32
  }
  func.func @transform_3(%arg0: i32) -> (i32, i32) {
    %c0_i32 = arith.constant 0 : i32
    %c0_i32_0 = arith.constant 0 : i32
    %c0_i32_1 = arith.constant 0 : i32
    return %c0_i32, %c0_i32_0 : i32, i32
  }
  func.func @transform_4(%arg0: i32) -> (i32, i32) {
    %c0_i32 = arith.constant 0 : i32
    %c0_i32_0 = arith.constant 0 : i32
    %c0_i32_1 = arith.constant 0 : i32
    return %c0_i32, %c0_i32_0 : i32, i32
  }
  func.func @transform_5(%arg0: i32) -> (i32, i32) {
    %c0_i32 = arith.constant 0 : i32
    %c0_i32_0 = arith.constant 0 : i32
    %c0_i32_1 = arith.constant 0 : i32
    return %c0_i32, %c0_i32_0 : i32, i32
  }
  func.func @transform_6(%arg0: i32) -> (i32, i32) {
    %c0_i32 = arith.constant 0 : i32
    %c0_i32_0 = arith.constant 0 : i32
    %c0_i32_1 = arith.constant 0 : i32
    return %c0_i32, %c0_i32_0 : i32, i32
  }
  func.func @transform_7(%arg0: i32) -> (i32, i32) {
    %c0_i32 = arith.constant 0 : i32
    %c0_i32_0 = arith.constant 0 : i32
    return %arg0, %c0_i32 : i32, i32
  }
}

</mosaic_0001>

<llo_original>
// kernel: elastic_mha_forward.5
$region0: #{elastic_mha_forward.5}
  #allocation0 [shape = 'u32[]', space=smem, size = 0x4, offset = 0x4, fixed_abs, tag = 'smem constant byte address 0x4 - core index']
  #allocation1 [shape = 'u32[72,128]{1,0:T(1,128)}', space=vmem, size = 0x9000, scoped, tag = 'internal scratch']
  %s0 = inlined_call_operand.vmem [shape: f32[256,128], index: 0, kind: input, shape index: {}]
  %s1 = inlined_call_operand.hbm [shape: f32[128,128], index: 1, kind: input, shape index: {}]
  %s2 = inlined_call_operand.vmem [shape: f32[1,128], index: 2, kind: input, shape index: {}]
  %s3 = inlined_call_operand.hbm [shape: f32[256,128], index: 3, kind: input, shape index: {}]
  %s4 = inlined_call_operand.hbm [shape: f32[256,128], index: 4, kind: output, shape index: {}]
  %s5 = sld [smem:[#allocation0]]
  $region34: #{elastic_mha_forward.5} parent=0
    _
  %s7 = ssub.s32 1, %s5
  %s8 = scalar_select 0, %s7, %s5
  $region1: #{elastic_mha_forward.5} parent=0
    #allocation2 [shape = 'u8[65536]{0}', space=vmem, size = 0x10000, scoped, tag = 'input window, operand 1, single buffered']
    #allocation3 [shape = 's32[1]{0}', space=sflag, size = 0x4, scoped, tag = 'scoped memory for elastic_mha_forward.5']
    #allocation4 [shape = 's32[1]{0}', space=sflag, size = 0x4, scoped, tag = 'scoped memory for elastic_mha_forward.5']
    #allocation5 [shape = 'u8[131072]{0}', space=vmem, size = 0x20000, scoped, tag = 'input window, operand 3, single buffered']
    #allocation6 [shape = 's32[1]{0}', space=sflag, size = 0x4, scoped, tag = 'scoped memory for elastic_mha_forward.5']
    #allocation7 [shape = 'u8[131072]{0}', space=vmem, size = 0x20000, scoped, tag = 'output window, operand 0, single buffered']
    %9 = vsyncpa [#allocation3], 0
    %10 = vsyncpa [#allocation6], 0
    %11 = vsyncpa [#allocation4], 0
    // Predicated region
    $region2: #{elastic_mha_forward.5} parent=1 // pred_check
      _
    $region3: #{elastic_mha_forward.5} parent=1 // pred_check_branch
      %13 = sbr.rel (0) target = $region5
    $region4: #{elastic_mha_forward.5} parent=1 // pred_region
      _
    $region5: #{elastic_mha_forward.5} parent=1 // pred_fallthru
      _
    // Predicated region
    $region6: #{elastic_mha_forward.5} parent=1 // pred_check
      _
    $region7: #{elastic_mha_forward.5} parent=1 // pred_check_branch
      %15 = sbr.rel (0) target = $region9
    $region8: #{elastic_mha_forward.5} parent=1 // pred_region
      %17 = vsyncadd [#allocation3], 0
      %s18 = sshll.u32 %s1, 4
      %s19 = int_to_ptr.hbm [resolvable:$true] %s18
      %s20 = sshll.u32 [#allocation2], 4
      %s21 = int_to_ptr.vmem [resolvable:$true] %s20
      %26 = dma.hbm_to_vmem [thread:$0]  %s19, 2048, %s21, [#allocation3], 128, 128, 8
    $region9: #{elastic_mha_forward.5} parent=1 // pred_fallthru
      _
    // Predicated region
    $region10: #{elastic_mha_forward.5} parent=1 // pred_check
      _
    $region11: #{elastic_mha_forward.5} parent=1 // pred_check_branch
      %28 = sbr.rel (0) target = $region13
    $region12: #{elastic_mha_forward.5} parent=1 // pred_region
      _
    $region13: #{elastic_mha_forward.5} parent=1 // pred_fallthru
      _
    // Predicated region
    $region14: #{elastic_mha_forward.5} parent=1 // pred_check
      _
    $region15: #{elastic_mha_forward.5} parent=1 // pred_check_branch
      %30 = sbr.rel (0) target = $region17
    $region16: #{elastic_mha_forward.5} parent=1 // pred_region
      %32 = vsyncadd [#allocation6], 0
      %s33 = sshll.u32 %s3, 4
      %s34 = int_to_ptr.hbm [resolvable:$true] %s33
      %s35 = sshll.u32 [#allocation5], 4
      %s36 = int_to_ptr.vmem [resolvable:$true] %s35
      %41 = dma.hbm_to_vmem [thread:$0]  %s34, 4096, %s36, [#allocation6], 128, 128, 8
    $region17: #{elastic_mha_forward.5} parent=1 // pred_fallthru
      _
    // Predicated region
    $region18: #{elastic_mha_forward.5} parent=1 // pred_check
      _
    $region19: #{elastic_mha_forward.5} parent=1 // pred_check_branch
      %43 = sbr.rel (0) target = $region21
    $region20: #{elastic_mha_forward.5} parent=1 // pred_region
      %45 = dma.done [#allocation3], 2048
    $region21: #{elastic_mha_forward.5} parent=1 // pred_fallthru
      _
    // Predicated region
    $region22: #{elastic_mha_forward.5} parent=1 // pred_check
      _
    $region23: #{elastic_mha_forward.5} parent=1 // pred_check_branch
      %47 = sbr.rel (0) target = $region25
    $region24: #{elastic_mha_forward.5} parent=1 // pred_region
      %49 = dma.done [#allocation6], 4096
    $region25: #{elastic_mha_forward.5} parent=1 // pred_fallthru
      _
    %v50 = vld [vmem:[%s0] sm:$0xff]
    %v51 = vld [vmem:[%s0 + $0x8] sm:$0xff]
    %v52 = vld [vmem:[%s0 + $0x10] sm:$0xff]
    %v53 = vld [vmem:[%s0 + $0x18] sm:$0xff]
    %v54 = vld [vmem:[%s0 + $0x20] sm:$0xff]
    %v55 = vld [vmem:[%s0 + $0x28] sm:$0xff]
    %v56 = vld [vmem:[%s0 + $0x30] sm:$0xff]
    %v57 = vld [vmem:[%s0 + $0x38] sm:$0xff]
    %v58 = vld [vmem:[%s0 + $0x40] sm:$0xff]
    %v59 = vld [vmem:[%s0 + $0x48] sm:$0xff]
    %v60 = vld [vmem:[%s0 + $0x50] sm:$0xff]
    %v61 = vld [vmem:[%s0 + $0x58] sm:$0xff]
    %v62 = vld [vmem:[%s0 + $0x60] sm:$0xff]
    %v63 = vld [vmem:[%s0 + $0x68] sm:$0xff]
    %v64 = vld [vmem:[%s0 + $0x70] sm:$0xff]
    %v65 = vld [vmem:[%s0 + $0x78] sm:$0xff]
    %v66 = vld [vmem:[%s0 + $0x80] sm:$0xff]
    %v67 = vld [vmem:[%s0 + $0x88] sm:$0xff]
    %v68 = vld [vmem:[%s0 + $0x90] sm:$0xff]
    %v69 = vld [vmem:[%s0 + $0x98] sm:$0xff]
    %v70 = vld [vmem:[%s0 + $0xa0] sm:$0xff]
    %v71 = vld [vmem:[%s0 + $0xa8] sm:$0xff]
    %v72 = vld [vmem:[%s0 + $0xb0] sm:$0xff]
    %v73 = vld [vmem:[%s0 + $0xb8] sm:$0xff]
    %v74 = vld [vmem:[%s0 + $0xc0] sm:$0xff]
    %v75 = vld [vmem:[%s0 + $0xc8] sm:$0xff]
    %v76 = vld [vmem:[%s0 + $0xd0] sm:$0xff]
    %v77 = vld [vmem:[%s0 + $0xd8] sm:$0xff]
    %v78 = vld [vmem:[%s0 + $0xe0] sm:$0xff]
    %v79 = vld [vmem:[%s0 + $0xe8] sm:$0xff]
    %v80 = vld [vmem:[%s0 + $0xf0] sm:$0xff]
    %v81 = vld [vmem:[%s0 + $0xf8] sm:$0xff]
    %v82 = vpack.c.bf16 %v51, %v50
    %v83 = vpack.c.bf16 %v53, %v52
    %v84 = vpack.c.bf16 %v55, %v54
    %v85 = vpack.c.bf16 %v57, %v56
    %v86 = vpack.c.bf16 %v59, %v58
    %v87 = vpack.c.bf16 %v61, %v60
    %v88 = vpack.c.bf16 %v63, %v62
    %v89 = vpack.c.bf16 %v65, %v64
    %v90 = vpack.c.bf16 %v67, %v66
    %v91 = vpack.c.bf16 %v69, %v68
    %v92 = vpack.c.bf16 %v71, %v70
    %v93 = vpack.c.bf16 %v73, %v72
    %v94 = vpack.c.bf16 %v75, %v74
    %v95 = vpack.c.bf16 %v77, %v76
    %v96 = vpack.c.bf16 %v79, %v78
    %v97 = vpack.c.bf16 %v81, %v80
    %v98 = vld [vmem:[#allocation2] sm:$0xff]
    %v99 = vld [vmem:[#allocation2 + $0x8] sm:$0xff]
    %v100 = vld [vmem:[#allocation2 + $0x10] sm:$0xff]
    %v101 = vld [vmem:[#allocation2 + $0x18] sm:$0xff]
    %v102 = vld [vmem:[#allocation2 + $0x20] sm:$0xff]
    %v103 = vld [vmem:[#allocation2 + $0x28] sm:$0xff]
    %v104 = vld [vmem:[#allocation2 + $0x30] sm:$0xff]
    %v105 = vld [vmem:[#allocation2 + $0x38] sm:$0xff]
    %v106 = vld [vmem:[#allocation2 + $0x40] sm:$0xff]
    %v107 = vld [vmem:[#allocation2 + $0x48] sm:$0xff]
    %v108 = vld [vmem:[#allocation2 + $0x50] sm:$0xff]
    %v109 = vld [vmem:[#allocation2 + $0x58] sm:$0xff]
    %v110 = vld [vmem:[#allocation2 + $0x60] sm:$0xff]
    %v111 = vld [vmem:[#allocation2 + $0x68] sm:$0xff]
    %v112 = vld [vmem:[#allocation2 + $0x70] sm:$0xff]
    %v113 = vld [vmem:[#allocation2 + $0x78] sm:$0xff]
    %v114 = vpack.c.bf16 %v99, %v98
    %v115 = vpack.c.bf16 %v101, %v100
    %v116 = vpack.c.bf16 %v103, %v102
    %v117 = vpack.c.bf16 %v105, %v104
    %v118 = vpack.c.bf16 %v107, %v106
    %v119 = vpack.c.bf16 %v109, %v108
    %v120 = vpack.c.bf16 %v111, %v110
    %v121 = vpack.c.bf16 %v113, %v112
    %v122 = vld [vmem:[%s2] sm:$0x1]
    %v124 = vperm.slane %v122, 0
    %126 = vmatpush.bf16.msra.mxu0 %v121
    %127 = vmatpush.bf16.msra.mxu0 %v120
    %128 = vmatpush.bf16.msra.mxu0 %v119
    %129 = vmatpush.bf16.msra.mxu0 %v118
    %130 = vmatpush.bf16.msra.mxu0 %v117
    %131 = vmatpush.bf16.msra.mxu0 %v116
    %132 = vmatpush.bf16.msra.mxu0 %v115
    %133 = vmatpush.bf16.msra.mxu0 %v114
    %134 = vmatmul.bf16.gmra.mxu0 %v82
    %v135 = vpop.f32.mrf.mxu0
    %v136 = vadd.f32 %v124, %v135
    %v137 = vpop.f32.mrf.mxu0
    %v138 = vadd.f32 %v124, %v137
    %139 = vmatmul.bf16.gmra.mxu0 %v83
    %v140 = vpop.f32.mrf.mxu0
    %v141 = vadd.f32 %v124, %v140
    %v142 = vpop.f32.mrf.mxu0
    %v143 = vadd.f32 %v124, %v142
    %144 = vmatmul.bf16.gmra.mxu0 %v84
    %v145 = vpop.f32.mrf.mxu0
    %v146 = vadd.f32 %v124, %v145
    %v147 = vpop.f32.mrf.mxu0
    %v148 = vadd.f32 %v124, %v147
    %149 = vmatmul.bf16.gmra.mxu0 %v85
    %v150 = vpop.f32.mrf.mxu0
    %v151 = vadd.f32 %v124, %v150
    %v152 = vpop.f32.mrf.mxu0
    %v153 = vadd.f32 %v124, %v152
    %154 = vmatmul.bf16.gmra.mxu0 %v86
    %v155 = vpop.f32.mrf.mxu0
    %v156 = vadd.f32 %v124, %v155
    %v157 = vpop.f32.mrf.mxu0
    %v158 = vadd.f32 %v124, %v157
    %159 = vmatmul.bf16.gmra.mxu0 %v87
    %v160 = vpop.f32.mrf.mxu0
    %v161 = vadd.f32 %v124, %v160
    %v162 = vpop.f32.mrf.mxu0
    %v163 = vadd.f32 %v124, %v162
    %164 = vmatmul.bf16.gmra.mxu0 %v88
    %v165 = vpop.f32.mrf.mxu0
    %v166 = vadd.f32 %v124, %v165
    %v167 = vpop.f32.mrf.mxu0
    %v168 = vadd.f32 %v124, %v167
    %169 = vmatmul.bf16.gmra.mxu0 %v89
    %v170 = vpop.f32.mrf.mxu0
    %v171 = vadd.f32 %v124, %v170
    %v172 = vpop.f32.mrf.mxu0
    %v173 = vadd.f32 %v124, %v172
    %174 = vmatmul.bf16.gmra.mxu0 %v90
    %v175 = vpop.f32.mrf.mxu0
    %v176 = vadd.f32 %v124, %v175
    %v177 = vpop.f32.mrf.mxu0
    %v178 = vadd.f32 %v124, %v177
    %179 = vmatmul.bf16.gmra.mxu0 %v91
    %v180 = vpop.f32.mrf.mxu0
    %v181 = vadd.f32 %v124, %v180
    %v182 = vpop.f32.mrf.mxu0
    %v183 = vadd.f32 %v124, %v182
    %184 = vmatmul.bf16.gmra.mxu0 %v92
    %v185 = vpop.f32.mrf.mxu0
    %v186 = vadd.f32 %v124, %v185
    %v187 = vpop.f32.mrf.mxu0
    %v188 = vadd.f32 %v124, %v187
    %189 = vmatmul.bf16.gmra.mxu0 %v93
    %v190 = vpop.f32.mrf.mxu0
    %v191 = vadd.f32 %v124, %v190
    %v192 = vpop.f32.mrf.mxu0
    %v193 = vadd.f32 %v124, %v192
    %194 = vmatmul.bf16.gmra.mxu0 %v94
    %v195 = vpop.f32.mrf.mxu0
    %v196 = vadd.f32 %v124, %v195
    %v197 = vpop.f32.mrf.mxu0
    %v198 = vadd.f32 %v124, %v197
    %199 = vmatmul.bf16.gmra.mxu0 %v95
    %v200 = vpop.f32.mrf.mxu0
    %v201 = vadd.f32 %v124, %v200
    %v202 = vpop.f32.mrf.mxu0
    %v203 = vadd.f32 %v124, %v202
    %204 = vmatmul.bf16.gmra.mxu0 %v96
    %v205 = vpop.f32.mrf.mxu0
    %v206 = vadd.f32 %v124, %v205
    %v207 = vpop.f32.mrf.mxu0
    %v208 = vadd.f32 %v124, %v207
    %209 = vmatmul.bf16.gmra.mxu0 %v97
    %v210 = vpop.f32.mrf.mxu0
    %v211 = vadd.f32 %v124, %v210
    %v212 = vpop.f32.mrf.mxu0
    %v213 = vadd.f32 %v124, %v212
    %214 = vdwg.mxu0
    %v215 = vld [vmem:[#allocation5] sm:$0xff]
    %v216 = vld [vmem:[#allocation5 + $0x8] sm:$0xff]
    %v217 = vld [vmem:[#allocation5 + $0x10] sm:$0xff]
    %v218 = vld [vmem:[#allocation5 + $0x18] sm:$0xff]
    %v219 = vld [vmem:[#allocation5 + $0x20] sm:$0xff]
    %v220 = vld [vmem:[#allocation5 + $0x28] sm:$0xff]
    %v221 = vld [vmem:[#allocation5 + $0x30] sm:$0xff]
    %v222 = vld [vmem:[#allocation5 + $0x38] sm:$0xff]
    %v223 = vld [vmem:[#allocation5 + $0x40] sm:$0xff]
    %v224 = vld [vmem:[#allocation5 + $0x48] sm:$0xff]
    %v225 = vld [vmem:[#allocation5 + $0x50] sm:$0xff]
    %v226 = vld [vmem:[#allocation5 + $0x58] sm:$0xff]
    %v227 = vld [vmem:[#allocation5 + $0x60] sm:$0xff]
    %v228 = vld [vmem:[#allocation5 + $0x68] sm:$0xff]
    %v229 = vld [vmem:[#allocation5 + $0x70] sm:$0xff]
    %v230 = vld [vmem:[#allocation5 + $0x78] sm:$0xff]
    %v231 = vld [vmem:[#allocation5 + $0x80] sm:$0xff]
    %v232 = vld [vmem:[#allocation5 + $0x88] sm:$0xff]
    %v233 = vld [vmem:[#allocation5 + $0x90] sm:$0xff]
    %v234 = vld [vmem:[#allocation5 + $0x98] sm:$0xff]
    %v235 = vld [vmem:[#allocation5 + $0xa0] sm:$0xff]
    %v236 = vld [vmem:[#allocation5 + $0xa8] sm:$0xff]
    %v237 = vld [vmem:[#allocation5 + $0xb0] sm:$0xff]
    %v238 = vld [vmem:[#allocation5 + $0xb8] sm:$0xff]
    %v239 = vld [vmem:[#allocation5 + $0xc0] sm:$0xff]
    %v240 = vld [vmem:[#allocation5 + $0xc8] sm:$0xff]
    %v241 = vld [vmem:[#allocation5 + $0xd0] sm:$0xff]
    %v242 = vld [vmem:[#allocation5 + $0xd8] sm:$0xff]
    %v243 = vld [vmem:[#allocation5 + $0xe0] sm:$0xff]
    %v244 = vld [vmem:[#allocation5 + $0xe8] sm:$0xff]
    %v245 = vld [vmem:[#allocation5 + $0xf0] sm:$0xff]
    %v246 = vld [vmem:[#allocation5 + $0xf8] sm:$0xff]
    %v247 = vadd.f32 %v136, %v215
    %v248 = vadd.f32 %v138, %v216
    %v249 = vadd.f32 %v141, %v217
    %v250 = vadd.f32 %v143, %v218
    %v251 = vadd.f32 %v146, %v219
    %v252 = vadd.f32 %v148, %v220
    %v253 = vadd.f32 %v151, %v221
    %v254 = vadd.f32 %v153, %v222
    %v255 = vadd.f32 %v156, %v223
    %v256 = vadd.f32 %v158, %v224
    %v257 = vadd.f32 %v161, %v225
    %v258 = vadd.f32 %v163, %v226
    %v259 = vadd.f32 %v166, %v227
    %v260 = vadd.f32 %v168, %v228
    %v261 = vadd.f32 %v171, %v229
    %v262 = vadd.f32 %v173, %v230
    %v263 = vadd.f32 %v176, %v231
    %v264 = vadd.f32 %v178, %v232
    %v265 = vadd.f32 %v181, %v233
    %v266 = vadd.f32 %v183, %v234
    %v267 = vadd.f32 %v186, %v235
    %v268 = vadd.f32 %v188, %v236
    %v269 = vadd.f32 %v191, %v237
    %v270 = vadd.f32 %v193, %v238
    %v271 = vadd.f32 %v196, %v239
    %v272 = vadd.f32 %v198, %v240
    %v273 = vadd.f32 %v201, %v241
    %v274 = vadd.f32 %v203, %v242
    %v275 = vadd.f32 %v206, %v243
    %v276 = vadd.f32 %v208, %v244
    %v277 = vadd.f32 %v211, %v245
    %v278 = vadd.f32 %v213, %v246
    %279 = vst [vmem:[#allocation7] sm:$0xff] %v247
    %280 = vst [vmem:[#allocation7 + $0x8] sm:$0xff] %v248
    %281 = vst [vmem:[#allocation7 + $0x10] sm:$0xff] %v249
    %282 = vst [vmem:[#allocation7 + $0x18] sm:$0xff] %v250
    %283 = vst [vmem:[#allocation7 + $0x20] sm:$0xff] %v251
    %284 = vst [vmem:[#allocation7 + $0x28] sm:$0xff] %v252
    %285 = vst [vmem:[#allocation7 + $0x30] sm:$0xff] %v253
    %286 = vst [vmem:[#allocation7 + $0x38] sm:$0xff] %v254
    %287 = vst [vmem:[#allocation7 + $0x40] sm:$0xff] %v255
    %288 = vst [vmem:[#allocation7 + $0x48] sm:$0xff] %v256
    %289 = vst [vmem:[#allocation7 + $0x50] sm:$0xff] %v257
    %290 = vst [vmem:[#allocation7 + $0x58] sm:$0xff] %v258
    %291 = vst [vmem:[#allocation7 + $0x60] sm:$0xff] %v259
    %292 = vst [vmem:[#allocation7 + $0x68] sm:$0xff] %v260
    %293 = vst [vmem:[#allocation7 + $0x70] sm:$0xff] %v261
    %294 = vst [vmem:[#allocation7 + $0x78] sm:$0xff] %v262
    %295 = vst [vmem:[#allocation7 + $0x80] sm:$0xff] %v263
    %296 = vst [vmem:[#allocation7 + $0x88] sm:$0xff] %v264
    %297 = vst [vmem:[#allocation7 + $0x90] sm:$0xff] %v265
    %298 = vst [vmem:[#allocation7 + $0x98] sm:$0xff] %v266
    %299 = vst [vmem:[#allocation7 + $0xa0] sm:$0xff] %v267
    %300 = vst [vmem:[#allocation7 + $0xa8] sm:$0xff] %v268
    %301 = vst [vmem:[#allocation7 + $0xb0] sm:$0xff] %v269
    %302 = vst [vmem:[#allocation7 + $0xb8] sm:$0xff] %v270
    %303 = vst [vmem:[#allocation7 + $0xc0] sm:$0xff] %v271
    %304 = vst [vmem:[#allocation7 + $0xc8] sm:$0xff] %v272
    %305 = vst [vmem:[#allocation7 + $0xd0] sm:$0xff] %v273
    %306 = vst [vmem:[#allocation7 + $0xd8] sm:$0xff] %v274
    %307 = vst [vmem:[#allocation7 + $0xe0] sm:$0xff] %v275
    %308 = vst [vmem:[#allocation7 + $0xe8] sm:$0xff] %v276
    %309 = vst [vmem:[#allocation7 + $0xf0] sm:$0xff] %v277
    %310 = vst [vmem:[#allocation7 + $0xf8] sm:$0xff] %v278
    // Predicated region
    $region26: #{elastic_mha_forward.5} parent=1 // pred_check
      _
    $region27: #{elastic_mha_forward.5} parent=1 // pred_check_branch
      %312 = sbr.rel (0) target = $region29
    $region28: #{elastic_mha_forward.5} parent=1 // pred_region
      %314 = vsyncadd [#allocation4], 0
      %s315 = sshll.u32 [#allocation7], 4
      %s316 = int_to_ptr.vmem [resolvable:$true] %s315
      %s317 = sshll.u32 %s4, 4
      %s318 = int_to_ptr.hbm [resolvable:$true] %s317
      %323 = dma.vmem_to_hbm [thread:$0]  %s316, 4096, %s318, [#allocation4], 128, 128, 8
    $region29: #{elastic_mha_forward.5} parent=1 // pred_fallthru
      _
    // Predicated region
    $region30: #{elastic_mha_forward.5} parent=1 // pred_check
      _
    $region31: #{elastic_mha_forward.5} parent=1 // pred_check_branch
      %325 = sbr.rel (0) target = $region33
    $region32: #{elastic_mha_forward.5} parent=1 // pred_region
      %327 = dma.done [#allocation4], 4096
    $region33: #{elastic_mha_forward.5} parent=1 // pred_fallthru
      _
    %328 = vsyncpa [#allocation3], 1
    %329 = vsyncpa [#allocation6], 1
    %330 = vsyncpa [#allocation4], 1

// kernel: elastic_mha_forward.3
$region0: #{elastic_mha_forward.3}
  #allocation0 [shape = 'u32[]', space=smem, size = 0x4, offset = 0x4, fixed_abs, tag = 'smem constant byte address 0x4 - core index']
  #allocation1 [shape = 'u32[72,128]{1,0:T(1,128)}', space=vmem, size = 0x9000, scoped, tag = 'internal scratch']
  %s0 = inlined_call_operand.hbm [shape: f32[256,128], index: 0, kind: input, shape index: {}]
  %s1 = inlined_call_operand.hbm [shape: f32[256,128], index: 1, kind: input, shape index: {}]
  %s2 = inlined_call_operand.hbm [shape: f32[256,128], index: 2, kind: input, shape index: {}]
  %s3 = inlined_call_operand.hbm [shape: f32[128,128], index: 3, kind: input, shape index: {}]
  %s4 = inlined_call_operand.hbm [shape: f32[128,128], index: 4, kind: input, shape index: {}]
  %s5 = inlined_call_operand.hbm [shape: f32[128,128], index: 5, kind: input, shape index: {}]
  %s6 = inlined_call_operand.vmem [shape: f32[1,384], index: 6, kind: input, shape index: {}]
  %s7 = inlined_call_operand.vmem [shape: f32[256,384], index: 7, kind: output, shape index: {}]
  %s8 = sld [smem:[#allocation0]]
  $region62: #{elastic_mha_forward.3} parent=0
    _
  %s10 = ssub.s32 1, %s8
  %s11 = scalar_select 0, %s10, %s8
  $region1: #{elastic_mha_forward.3} parent=0
    #allocation2 [shape = 'u8[131072]{0}', space=vmem, size = 0x20000, scoped, tag = 'input window, operand 0, single buffered']
    #allocation3 [shape = 's32[1]{0}', space=sflag, size = 0x4, scoped, tag = 'scoped memory for elastic_mha_forward.3']
    #allocation4 [shape = 'u8[131072]{0}', space=vmem, size = 0x20000, scoped, tag = 'input window, operand 1, single buffered']
    #allocation5 [shape = 's32[1]{0}', space=sflag, size = 0x4, scoped, tag = 'scoped memory for elastic_mha_forward.3']
    #allocation6 [shape = 'u8[131072]{0}', space=vmem, size = 0x20000, scoped, tag = 'input window, operand 2, single buffered']
    #allocation7 [shape = 'u8[65536]{0}', space=vmem, size = 0x10000, scoped, tag = 'input window, operand 3, single buffered']
    #allocation8 [shape = 's32[1]{0}', space=sflag, size = 0x4, scoped, tag = 'scoped memory for elastic_mha_forward.3']
    #allocation9 [shape = 'u8[65536]{0}', space=vmem, size = 0x10000, scoped, tag = 'input window, operand 4, single buffered']
    #allocation10 [shape = 'u8[65536]{0}', space=vmem, size = 0x10000, scoped, tag = 'input window, operand 5, single buffered']
    #allocation11 [shape = 's32[1]{0}', space=sflag, size = 0x4, scoped, tag = 'scoped memory for elastic_mha_forward.3']
    %12 = vsyncpa [#allocation3], 0
    %13 = vsyncpa [#allocation5], 0
    %14 = vsyncpa [#allocation8], 0
    %15 = vsyncpa [#allocation11], 0
    // Predicated region
    $region2: #{elastic_mha_forward.3} parent=1 // pred_check
      _
    $region3: #{elastic_mha_forward.3} parent=1 // pred_check_branch
      %17 = sbr.rel (0) target = $region5
    $region4: #{elastic_mha_forward.3} parent=1 // pred_region
      %19 = vsyncadd [#allocation3], 0
      %s20 = sshll.u32 %s0, 4
      %s21 = int_to_ptr.hbm [resolvable:$true] %s20
      %s22 = sshll.u32 [#allocation2], 4
      %s23 = int_to_ptr.vmem [resolvable:$true] %s22
      %28 = dma.hbm_to_vmem [thread:$0]  %s21, 4096, %s23, [#allocation3], 128, 128, 8
    $region5: #{elastic_mha_forward.3} parent=1 // pred_fallthru
      _
    // Predicated region
    $region6: #{elastic_mha_forward.3} parent=1 // pred_check
      _
    $region7: #{elastic_mha_forward.3} parent=1 // pred_check_branch
      %30 = sbr.rel (0) target = $region9
    $region8: #{elastic_mha_forward.3} parent=1 // pred_region
      %32 = vsyncadd [#allocation5], 0
      %s33 = sshll.u32 %s1, 4
      %s34 = int_to_ptr.hbm [resolvable:$true] %s33
      %s35 = sshll.u32 [#allocation4], 4
      %s36 = int_to_ptr.vmem [resolvable:$true] %s35
      %41 = dma.hbm_to_vmem [thread:$0]  %s34, 4096, %s36, [#allocation5], 128, 128, 8
    $region9: #{elastic_mha_forward.3} parent=1 // pred_fallthru
      _
    // Predicated region
    $region10: #{elastic_mha_forward.3} parent=1 // pred_check
      _
    $region11: #{elastic_mha_forward.3} parent=1 // pred_check_branch
      %43 = sbr.rel (0) target = $region13
    $region12: #{elastic_mha_forward.3} parent=1 // pred_region
      %45 = vsyncadd [#allocation5], 0
      %s46 = sshll.u32 %s2, 4
      %s47 = int_to_ptr.hbm [resolvable:$true] %s46
      %s48 = sshll.u32 [#allocation6], 4
      %s49 = int_to_ptr.vmem [resolvable:$true] %s48
      %54 = dma.hbm_to_vmem [thread:$0]  %s47, 4096, %s49, [#allocation5], 128, 128, 8
    $region13: #{elastic_mha_forward.3} parent=1 // pred_fallthru
      _
    // Predicated region
    $region14: #{elastic_mha_forward.3} parent=1 // pred_check
      _
    $region15: #{elastic_mha_forward.3} parent=1 // pred_check_branch
      %56 = sbr.rel (0) target = $region17
    $region16: #{elastic_mha_forward.3} parent=1 // pred_region
      %58 = vsyncadd [#allocation8], 0
      %s59 = sshll.u32 %s3, 4
      %s60 = int_to_ptr.hbm [resolvable:$true] %s59
      %s61 = sshll.u32 [#allocation7], 4
      %s62 = int_to_ptr.vmem [resolvable:$true] %s61
      %67 = dma.hbm_to_vmem [thread:$0]  %s60, 2048, %s62, [#allocation8], 128, 128, 8
    $region17: #{elastic_mha_forward.3} parent=1 // pred_fallthru
      _
    // Predicated region
    $region18: #{elastic_mha_forward.3} parent=1 // pred_check
      _
    $region19: #{elastic_mha_forward.3} parent=1 // pred_check_branch
      %69 = sbr.rel (0) target = $region21
    $region20: #{elastic_mha_forward.3} parent=1 // pred_region
      %71 = vsyncadd [#allocation8], 0
      %s72 = sshll.u32 %s4, 4
      %s73 = int_to_ptr.hbm [resolvable:$true] %s72
      %s74 = sshll.u32 [#allocation9], 4
      %s75 = int_to_ptr.vmem [resolvable:$true] %s74
      %80 = dma.hbm_to_vmem [thread:$0]  %s73, 2048, %s75, [#allocation8], 128, 128, 8
    $region21: #{elastic_mha_forward.3} parent=1 // pred_fallthru
      _
    // Predicated region
    $region22: #{elastic_mha_forward.3} parent=1 // pred_check
      _
    $region23: #{elastic_mha_forward.3} parent=1 // pred_check_branch
      %82 = sbr.rel (0) target = $region25
    $region24: #{elastic_mha_forward.3} parent=1 // pred_region
      %84 = vsyncadd [#allocation11], 0
      %s85 = sshll.u32 %s5, 4
      %s86 = int_to_ptr.hbm [resolvable:$true] %s85
      %s87 = sshll.u32 [#allocation10], 4
      %s88 = int_to_ptr.vmem [resolvable:$true] %s87
      %93 = dma.hbm_to_vmem [thread:$0]  %s86, 2048, %s88, [#allocation11], 128, 128, 8
    $region25: #{elastic_mha_forward.3} parent=1 // pred_fallthru
      _
    // Predicated region
    $region26: #{elastic_mha_forward.3} parent=1 // pred_check
      _
    $region27: #{elastic_mha_forward.3} parent=1 // pred_check_branch
      %95 = sbr.rel (0) target = $region29
    $region28: #{elastic_mha_forward.3} parent=1 // pred_region
      _
    $region29: #{elastic_mha_forward.3} parent=1 // pred_fallthru
      _
    // Predicated region
    $region30: #{elastic_mha_forward.3} parent=1 // pred_check
      _
    $region31: #{elastic_mha_forward.3} parent=1 // pred_check_branch
      %97 = sbr.rel (0) target = $region33
    $region32: #{elastic_mha_forward.3} parent=1 // pred_region
      %99 = dma.done [#allocation3], 4096
    $region33: #{elastic_mha_forward.3} parent=1 // pred_fallthru
      _
    // Predicated region
    $region34: #{elastic_mha_forward.3} parent=1 // pred_check
      _
    $region35: #{elastic_mha_forward.3} parent=1 // pred_check_branch
      %101 = sbr.rel (0) target = $region37
    $region36: #{elastic_mha_forward.3} parent=1 // pred_region
      %103 = dma.done [#allocation5], 4096
    $region37: #{elastic_mha_forward.3} parent=1 // pred_fallthru
      _
    // Predicated region
    $region38: #{elastic_mha_forward.3} parent=1 // pred_check
      _
    $region39: #{elastic_mha_forward.3} parent=1 // pred_check_branch
      %105 = sbr.rel (0) target = $region41
    $region40: #{elastic_mha_forward.3} parent=1 // pred_region
      %107 = dma.done [#allocation5], 4096
    $region41: #{elastic_mha_forward.3} parent=1 // pred_fallthru
      _
    // Predicated region
    $region42: #{elastic_mha_forward.3} parent=1 // pred_check
      _
    $region43: #{elastic_mha_forward.3} parent=1 // pred_check_branch
      %109 = sbr.rel (0) target = $region45
    $region44: #{elastic_mha_forward.3} parent=1 // pred_region
      %111 = dma.done [#allocation8], 2048
    $region45: #{elastic_mha_forward.3} parent=1 // pred_fallthru
      _
    // Predicated region
    $region46: #{elastic_mha_forward.3} parent=1 // pred_check
      _
    $region47: #{elastic_mha_forward.3} parent=1 // pred_check_branch
      %113 = sbr.rel (0) target = $region49
    $region48: #{elastic_mha_forward.3} parent=1 // pred_region
      %115 = dma.done [#allocation8], 2048
    $region49: #{elastic_mha_forward.3} parent=1 // pred_fallthru
      _
    // Predicated region
    $region50: #{elastic_mha_forward.3} parent=1 // pred_check
      _
    $region51: #{elastic_mha_forward.3} parent=1 // pred_check_branch
      %117 = sbr.rel (0) target = $region53
    $region52: #{elastic_mha_forward.3} parent=1 // pred_region
      %119 = dma.done [#allocation11], 2048
    $region53: #{elastic_mha_forward.3} parent=1 // pred_fallthru
      _
    %v120 = vld [vmem:[#allocation2] sm:$0xff]
    %v121 = vld [vmem:[#allocation2 + $0x8] sm:$0xff]
    %v122 = vld [vmem:[#allocation2 + $0x10] sm:$0xff]
    %v123 = vld [vmem:[#allocation2 + $0x18] sm:$0xff]
    %v124 = vld [vmem:[#allocation2 + $0x20] sm:$0xff]
    %v125 = vld [vmem:[#allocation2 + $0x28] sm:$0xff]
    %v126 = vld [vmem:[#allocation2 + $0x30] sm:$0xff]
    %v127 = vld [vmem:[#allocation2 + $0x38] sm:$0xff]
    %v128 = vld [vmem:[#allocation2 + $0x40] sm:$0xff]
    %v129 = vld [vmem:[#allocation2 + $0x48] sm:$0xff]
    %v130 = vld [vmem:[#allocation2 + $0x50] sm:$0xff]
    %v131 = vld [vmem:[#allocation2 + $0x58] sm:$0xff]
    %v132 = vld [vmem:[#allocation2 + $0x60] sm:$0xff]
    %v133 = vld [vmem:[#allocation2 + $0x68] sm:$0xff]
    %v134 = vld [vmem:[#allocation2 + $0x70] sm:$0xff]
    %v135 = vld [vmem:[#allocation2 + $0x78] sm:$0xff]
    %v136 = vld [vmem:[#allocation2 + $0x80] sm:$0xff]
    %v137 = vld [vmem:[#allocation2 + $0x88] sm:$0xff]
    %v138 = vld [vmem:[#allocation2 + $0x90] sm:$0xff]
    %v139 = vld [vmem:[#allocation2 + $0x98] sm:$0xff]
    %v140 = vld [vmem:[#allocation2 + $0xa0] sm:$0xff]
    %v141 = vld [vmem:[#allocation2 + $0xa8] sm:$0xff]
    %v142 = vld [vmem:[#allocation2 + $0xb0] sm:$0xff]
    %v143 = vld [vmem:[#allocation2 + $0xb8] sm:$0xff]
    %v144 = vld [vmem:[#allocation2 + $0xc0] sm:$0xff]
    %v145 = vld [vmem:[#allocation2 + $0xc8] sm:$0xff]
    %v146 = vld [vmem:[#allocation2 + $0xd0] sm:$0xff]
    %v147 = vld [vmem:[#allocation2 + $0xd8] sm:$0xff]
    %v148 = vld [vmem:[#allocation2 + $0xe0] sm:$0xff]
    %v149 = vld [vmem:[#allocation2 + $0xe8] sm:$0xff]
    %v150 = vld [vmem:[#allocation2 + $0xf0] sm:$0xff]
    %v151 = vld [vmem:[#allocation2 + $0xf8] sm:$0xff]
    %v152 = vpack.c.bf16 %v121, %v120
    %v153 = vpack.c.bf16 %v123, %v122
    %v154 = vpack.c.bf16 %v125, %v124
    %v155 = vpack.c.bf16 %v127, %v126
    %v156 = vpack.c.bf16 %v129, %v128
    %v157 = vpack.c.bf16 %v131, %v130
    %v158 = vpack.c.bf16 %v133, %v132
    %v159 = vpack.c.bf16 %v135, %v134
    %v160 = vpack.c.bf16 %v137, %v136
    %v161 = vpack.c.bf16 %v139, %v138
    %v162 = vpack.c.bf16 %v141, %v140
    %v163 = vpack.c.bf16 %v143, %v142
    %v164 = vpack.c.bf16 %v145, %v144
    %v165 = vpack.c.bf16 %v147, %v146
    %v166 = vpack.c.bf16 %v149, %v148
    %v167 = vpack.c.bf16 %v151, %v150
    %v168 = vld [vmem:[#allocation7] sm:$0xff]
    %v169 = vld [vmem:[#allocation7 + $0x8] sm:$0xff]
    %v170 = vld [vmem:[#allocation7 + $0x10] sm:$0xff]
    %v171 = vld [vmem:[#allocation7 + $0x18] sm:$0xff]
    %v172 = vld [vmem:[#allocation7 + $0x20] sm:$0xff]
    %v173 = vld [vmem:[#allocation7 + $0x28] sm:$0xff]
    %v174 = vld [vmem:[#allocation7 + $0x30] sm:$0xff]
    %v175 = vld [vmem:[#allocation7 + $0x38] sm:$0xff]
    %v176 = vld [vmem:[#allocation7 + $0x40] sm:$0xff]
    %v177 = vld [vmem:[#allocation7 + $0x48] sm:$0xff]
    %v178 = vld [vmem:[#allocation7 + $0x50] sm:$0xff]
    %v179 = vld [vmem:[#allocation7 + $0x58] sm:$0xff]
    %v180 = vld [vmem:[#allocation7 + $0x60] sm:$0xff]
    %v181 = vld [vmem:[#allocation7 + $0x68] sm:$0xff]
    %v182 = vld [vmem:[#allocation7 + $0x70] sm:$0xff]
    %v183 = vld [vmem:[#allocation7 + $0x78] sm:$0xff]
    %v184 = vpack.c.bf16 %v169, %v168
    %v185 = vpack.c.bf16 %v171, %v170
    %v186 = vpack.c.bf16 %v173, %v172
    %v187 = vpack.c.bf16 %v175, %v174
    %v188 = vpack.c.bf16 %v177, %v176
    %v189 = vpack.c.bf16 %v179, %v178
    %v190 = vpack.c.bf16 %v181, %v180
    %v191 = vpack.c.bf16 %v183, %v182
    %192 = vmatpush.bf16.msra.mxu0 %v191
    %193 = vmatpush.bf16.msra.mxu0 %v190
    %194 = vmatpush.bf16.msra.mxu0 %v189
    %195 = vmatpush.bf16.msra.mxu0 %v188
    %196 = vmatpush.bf16.msra.mxu0 %v187
    %197 = vmatpush.bf16.msra.mxu0 %v186
    %198 = vmatpush.bf16.msra.mxu0 %v185
    %199 = vmatpush.bf16.msra.mxu0 %v184
    %200 = vmatmul.bf16.gmra.mxu0 %v152
    %v201 = vpop.f32.mrf.mxu0
    %v202 = vadd.f32 0.0, %v201
    %v203 = vpop.f32.mrf.mxu0
    %v204 = vadd.f32 0.0, %v203
    %205 = vmatmul.bf16.gmra.mxu0 %v153
    %v206 = vpop.f32.mrf.mxu0
    %v207 = vadd.f32 0.0, %v206
    %v208 = vpop.f32.mrf.mxu0
    %v209 = vadd.f32 0.0, %v208
    %210 = vmatmul.bf16.gmra.mxu0 %v154
    %v211 = vpop.f32.mrf.mxu0
    %v212 = vadd.f32 0.0, %v211
    %v213 = vpop.f32.mrf.mxu0
    %v214 = vadd.f32 0.0, %v213
    %215 = vmatmul.bf16.gmra.mxu0 %v155
    %v216 = vpop.f32.mrf.mxu0
    %v217 = vadd.f32 0.0, %v216
    %v218 = vpop.f32.mrf.mxu0
    %v219 = vadd.f32 0.0, %v218
    %220 = vmatmul.bf16.gmra.mxu0 %v156
    %v221 = vpop.f32.mrf.mxu0
    %v222 = vadd.f32 0.0, %v221
    %v223 = vpop.f32.mrf.mxu0
    %v224 = vadd.f32 0.0, %v223
    %225 = vmatmul.bf16.gmra.mxu0 %v157
    %v226 = vpop.f32.mrf.mxu0
    %v227 = vadd.f32 0.0, %v226
    %v228 = vpop.f32.mrf.mxu0
    %v229 = vadd.f32 0.0, %v228
    %230 = vmatmul.bf16.gmra.mxu0 %v158
    %v231 = vpop.f32.mrf.mxu0
    %v232 = vadd.f32 0.0, %v231
    %v233 = vpop.f32.mrf.mxu0
    %v234 = vadd.f32 0.0, %v233
    %235 = vmatmul.bf16.gmra.mxu0 %v159
    %v236 = vpop.f32.mrf.mxu0
    %v237 = vadd.f32 0.0, %v236
    %v238 = vpop.f32.mrf.mxu0
    %v239 = vadd.f32 0.0, %v238
    %240 = vmatmul.bf16.gmra.mxu0 %v160
    %v241 = vpop.f32.mrf.mxu0
    %v242 = vadd.f32 0.0, %v241
    %v243 = vpop.f32.mrf.mxu0
    %v244 = vadd.f32 0.0, %v243
    %245 = vmatmul.bf16.gmra.mxu0 %v161
    %v246 = vpop.f32.mrf.mxu0
    %v247 = vadd.f32 0.0, %v246
    %v248 = vpop.f32.mrf.mxu0
    %v249 = vadd.f32 0.0, %v248
    %250 = vmatmul.bf16.gmra.mxu0 %v162
    %v251 = vpop.f32.mrf.mxu0
    %v252 = vadd.f32 0.0, %v251
    %v253 = vpop.f32.mrf.mxu0
    %v254 = vadd.f32 0.0, %v253
    %255 = vmatmul.bf16.gmra.mxu0 %v163
    %v256 = vpop.f32.mrf.mxu0
    %v257 = vadd.f32 0.0, %v256
    %v258 = vpop.f32.mrf.mxu0
    %v259 = vadd.f32 0.0, %v258
    %260 = vmatmul.bf16.gmra.mxu0 %v164
    %v261 = vpop.f32.mrf.mxu0
    %v262 = vadd.f32 0.0, %v261
    %v263 = vpop.f32.mrf.mxu0
    %v264 = vadd.f32 0.0, %v263
    %265 = vmatmul.bf16.gmra.mxu0 %v165
    %v266 = vpop.f32.mrf.mxu0
    %v267 = vadd.f32 0.0, %v266
    %v268 = vpop.f32.mrf.mxu0
    %v269 = vadd.f32 0.0, %v268
    %270 = vmatmul.bf16.gmra.mxu0 %v166
    %v271 = vpop.f32.mrf.mxu0
    %v272 = vadd.f32 0.0, %v271
    %v273 = vpop.f32.mrf.mxu0
    %v274 = vadd.f32 0.0, %v273
    %275 = vmatmul.bf16.gmra.mxu0 %v167
    %v276 = vpop.f32.mrf.mxu0
    %v277 = vadd.f32 0.0, %v276
    %v278 = vpop.f32.mrf.mxu0
    %v279 = vadd.f32 0.0, %v278
    %280 = vdwg.mxu0
    %v281 = vld [vmem:[#allocation4] sm:$0xff]
    %v282 = vld [vmem:[#allocation4 + $0x8] sm:$0xff]
    %v283 = vld [vmem:[#allocation4 + $0x10] sm:$0xff]
    %v284 = vld [vmem:[#allocation4 + $0x18] sm:$0xff]
    %v285 = vld [vmem:[#allocation4 + $0x20] sm:$0xff]
    %v286 = vld [vmem:[#allocation4 + $0x28] sm:$0xff]
    %v287 = vld [vmem:[#allocation4 + $0x30] sm:$0xff]
    %v288 = vld [vmem:[#allocation4 + $0x38] sm:$0xff]
    %v289 = vld [vmem:[#allocation4 + $0x40] sm:$0xff]
    %v290 = vld [vmem:[#allocation4 + $0x48] sm:$0xff]
    %v291 = vld [vmem:[#allocation4 + $0x50] sm:$0xff]
    %v292 = vld [vmem:[#allocation4 + $0x58] sm:$0xff]
    %v293 = vld [vmem:[#allocation4 + $0x60] sm:$0xff]
    %v294 = vld [vmem:[#allocation4 + $0x68] sm:$0xff]
    %v295 = vld [vmem:[#allocation4 + $0x70] sm:$0xff]
    %v296 = vld [vmem:[#allocation4 + $0x78] sm:$0xff]
    %v297 = vld [vmem:[#allocation4 + $0x80] sm:$0xff]
    %v298 = vld [vmem:[#allocation4 + $0x88] sm:$0xff]
    %v299 = vld [vmem:[#allocation4 + $0x90] sm:$0xff]
    %v300 = vld [vmem:[#allocation4 + $0x98] sm:$0xff]
    %v301 = vld [vmem:[#allocation4 + $0xa0] sm:$0xff]
    %v302 = vld [vmem:[#allocation4 + $0xa8] sm:$0xff]
    %v303 = vld [vmem:[#allocation4 + $0xb0] sm:$0xff]
    %v304 = vld [vmem:[#allocation4 + $0xb8] sm:$0xff]
    %v305 = vld [vmem:[#allocation4 + $0xc0] sm:$0xff]
    %v306 = vld [vmem:[#allocation4 + $0xc8] sm:$0xff]
    %v307 = vld [vmem:[#allocation4 + $0xd0] sm:$0xff]
    %v308 = vld [vmem:[#allocation4 + $0xd8] sm:$0xff]
    %v309 = vld [vmem:[#allocation4 + $0xe0] sm:$0xff]
    %v310 = vld [vmem:[#allocation4 + $0xe8] sm:$0xff]
    %v311 = vld [vmem:[#allocation4 + $0xf0] sm:$0xff]
    %v312 = vld [vmem:[#allocation4 + $0xf8] sm:$0xff]
    %v313 = vpack.c.bf16 %v282, %v281
    %v314 = vpack.c.bf16 %v284, %v283
    %v315 = vpack.c.bf16 %v286, %v285
    %v316 = vpack.c.bf16 %v288, %v287
    %v317 = vpack.c.bf16 %v290, %v289
    %v318 = vpack.c.bf16 %v292, %v291
    %v319 = vpack.c.bf16 %v294, %v293
    %v320 = vpack.c.bf16 %v296, %v295
    %v321 = vpack.c.bf16 %v298, %v297
    %v322 = vpack.c.bf16 %v300, %v299
    %v323 = vpack.c.bf16 %v302, %v301
    %v324 = vpack.c.bf16 %v304, %v303
    %v325 = vpack.c.bf16 %v306, %v305
    %v326 = vpack.c.bf16 %v308, %v307
    %v327 = vpack.c.bf16 %v310, %v309
    %v328 = vpack.c.bf16 %v312, %v311
    %v329 = vld [vmem:[#allocation9] sm:$0xff]
    %v330 = vld [vmem:[#allocation9 + $0x8] sm:$0xff]
    %v331 = vld [vmem:[#allocation9 + $0x10] sm:$0xff]
    %v332 = vld [vmem:[#allocation9 + $0x18] sm:$0xff]
    %v333 = vld [vmem:[#allocation9 + $0x20] sm:$0xff]
    %v334 = vld [vmem:[#allocation9 + $0x28] sm:$0xff]
    %v335 = vld [vmem:[#allocation9 + $0x30] sm:$0xff]
    %v336 = vld [vmem:[#allocation9 + $0x38] sm:$0xff]
    %v337 = vld [vmem:[#allocation9 + $0x40] sm:$0xff]
    %v338 = vld [vmem:[#allocation9 + $0x48] sm:$0xff]
    %v339 = vld [vmem:[#allocation9 + $0x50] sm:$0xff]
    %v340 = vld [vmem:[#allocation9 + $0x58] sm:$0xff]
    %v341 = vld [vmem:[#allocation9 + $0x60] sm:$0xff]
    %v342 = vld [vmem:[#allocation9 + $0x68] sm:$0xff]
    %v343 = vld [vmem:[#allocation9 + $0x70] sm:$0xff]
    %v344 = vld [vmem:[#allocation9 + $0x78] sm:$0xff]
    %v345 = vpack.c.bf16 %v330, %v329
    %v346 = vpack.c.bf16 %v332, %v331
    %v347 = vpack.c.bf16 %v334, %v333
    %v348 = vpack.c.bf16 %v336, %v335
    %v349 = vpack.c.bf16 %v338, %v337
    %v350 = vpack.c.bf16 %v340, %v339
    %v351 = vpack.c.bf16 %v342, %v341
    %v352 = vpack.c.bf16 %v344, %v343
    %353 = vmatpush.bf16.msra.mxu0 %v352
    %354 = vmatpush.bf16.msra.mxu0 %v351
    %355 = vmatpush.bf16.msra.mxu0 %v350
    %356 = vmatpush.bf16.msra.mxu0 %v349
    %357 = vmatpush.bf16.msra.mxu0 %v348
    %358 = vmatpush.bf16.msra.mxu0 %v347
    %359 = vmatpush.bf16.msra.mxu0 %v346
    %360 = vmatpush.bf16.msra.mxu0 %v345
    %361 = vmatmul.bf16.gmra.mxu0 %v313
    %v362 = vpop.f32.mrf.mxu0
    %v363 = vadd.f32 0.0, %v362
    %v364 = vpop.f32.mrf.mxu0
    %v365 = vadd.f32 0.0, %v364
    %366 = vmatmul.bf16.gmra.mxu0 %v314
    %v367 = vpop.f32.mrf.mxu0
    %v368 = vadd.f32 0.0, %v367
    %v369 = vpop.f32.mrf.mxu0
    %v370 = vadd.f32 0.0, %v369
    %371 = vmatmul.bf16.gmra.mxu0 %v315
    %v372 = vpop.f32.mrf.mxu0
    %v373 = vadd.f32 0.0, %v372
    %v374 = vpop.f32.mrf.mxu0
    %v375 = vadd.f32 0.0, %v374
    %376 = vmatmul.bf16.gmra.mxu0 %v316
    %v377 = vpop.f32.mrf.mxu0
    %v378 = vadd.f32 0.0, %v377
    %v379 = vpop.f32.mrf.mxu0
    %v380 = vadd.f32 0.0, %v379
    %381 = vmatmul.bf16.gmra.mxu0 %v317
    %v382 = vpop.f32.mrf.mxu0
    %v383 = vadd.f32 0.0, %v382
    %v384 = vpop.f32.mrf.mxu0
    %v385 = vadd.f32 0.0, %v384
    %386 = vmatmul.bf16.gmra.mxu0 %v318
    %v387 = vpop.f32.mrf.mxu0
    %v388 = vadd.f32 0.0, %v387
    %v389 = vpop.f32.mrf.mxu0
    %v390 = vadd.f32 0.0, %v389
    %391 = vmatmul.bf16.gmra.mxu0 %v319
    %v392 = vpop.f32.mrf.mxu0
    %v393 = vadd.f32 0.0, %v392
    %v394 = vpop.f32.mrf.mxu0
    %v395 = vadd.f32 0.0, %v394
    %396 = vmatmul.bf16.gmra.mxu0 %v320
    %v397 = vpop.f32.mrf.mxu0
    %v398 = vadd.f32 0.0, %v397
    %v399 = vpop.f32.mrf.mxu0
    %v400 = vadd.f32 0.0, %v399
    %401 = vmatmul.bf16.gmra.mxu0 %v321
    %v402 = vpop.f32.mrf.mxu0
    %v403 = vadd.f32 0.0, %v402
    %v404 = vpop.f32.mrf.mxu0
    %v405 = vadd.f32 0.0, %v404
    %406 = vmatmul.bf16.gmra.mxu0 %v322
    %v407 = vpop.f32.mrf.mxu0
    %v408 = vadd.f32 0.0, %v407
    %v409 = vpop.f32.mrf.mxu0
    %v410 = vadd.f32 0.0, %v409
    %411 = vmatmul.bf16.gmra.mxu0 %v323
    %v412 = vpop.f32.mrf.mxu0
    %v413 = vadd.f32 0.0, %v412
    %v414 = vpop.f32.mrf.mxu0
    %v415 = vadd.f32 0.0, %v414
    %416 = vmatmul.bf16.gmra.mxu0 %v324
    %v417 = vpop.f32.mrf.mxu0
    %v418 = vadd.f32 0.0, %v417
    %v419 = vpop.f32.mrf.mxu0
    %v420 = vadd.f32 0.0, %v419
    %421 = vmatmul.bf16.gmra.mxu0 %v325
    %v422 = vpop.f32.mrf.mxu0
    %v423 = vadd.f32 0.0, %v422
    %v424 = vpop.f32.mrf.mxu0
    %v425 = vadd.f32 0.0, %v424
    %426 = vmatmul.bf16.gmra.mxu0 %v326
    %v427 = vpop.f32.mrf.mxu0
    %v428 = vadd.f32 0.0, %v427
    %v429 = vpop.f32.mrf.mxu0
    %v430 = vadd.f32 0.0, %v429
    %431 = vmatmul.bf16.gmra.mxu0 %v327
    %v432 = vpop.f32.mrf.mxu0
    %v433 = vadd.f32 0.0, %v432
    %v434 = vpop.f32.mrf.mxu0
    %v435 = vadd.f32 0.0, %v434
    %436 = vmatmul.bf16.gmra.mxu0 %v328
    %v437 = vpop.f32.mrf.mxu0
    %v438 = vadd.f32 0.0, %v437
    %v439 = vpop.f32.mrf.mxu0
    %v440 = vadd.f32 0.0, %v439
    %441 = vdwg.mxu0
    %v442 = vld [vmem:[#allocation6] sm:$0xff]
    %v443 = vld [vmem:[#allocation6 + $0x8] sm:$0xff]
    %v444 = vld [vmem:[#allocation6 + $0x10] sm:$0xff]
    %v445 = vld [vmem:[#allocation6 + $0x18] sm:$0xff]
    %v446 = vld [vmem:[#allocation6 + $0x20] sm:$0xff]
    %v447 = vld [vmem:[#allocation6 + $0x28] sm:$0xff]
    %v448 = vld [vmem:[#allocation6 + $0x30] sm:$0xff]
    %v449 = vld [vmem:[#allocation6 + $0x38] sm:$0xff]
    %v450 = vld [vmem:[#allocation6 + $0x40] sm:$0xff]
    %v451 = vld [vmem:[#allocation6 + $0x48] sm:$0xff]
    %v452 = vld [vmem:[#allocation6 + $0x50] sm:$0xff]
    %v453 = vld [vmem:[#allocation6 + $0x58] sm:$0xff]
    %v454 = vld [vmem:[#allocation6 + $0x60] sm:$0xff]
    %v455 = vld [vmem:[#allocation6 + $0x68] sm:$0xff]
    %v456 = vld [vmem:[#allocation6 + $0x70] sm:$0xff]
    %v457 = vld [vmem:[#allocation6 + $0x78] sm:$0xff]
    %v458 = vld [vmem:[#allocation6 + $0x80] sm:$0xff]
    %v459 = vld [vmem:[#allocation6 + $0x88] sm:$0xff]
    %v460 = vld [vmem:[#allocation6 + $0x90] sm:$0xff]
    %v461 = vld [vmem:[#allocation6 + $0x98] sm:$0xff]
    %v462 = vld [vmem:[#allocation6 + $0xa0] sm:$0xff]
    %v463 = vld [vmem:[#allocation6 + $0xa8] sm:$0xff]
    %v464 = vld [vmem:[#allocation6 + $0xb0] sm:$0xff]
    %v465 = vld [vmem:[#allocation6 + $0xb8] sm:$0xff]
    %v466 = vld [vmem:[#allocation6 + $0xc0] sm:$0xff]
    %v467 = vld [vmem:[#allocation6 + $0xc8] sm:$0xff]
    %v468 = vld [vmem:[#allocation6 + $0xd0] sm:$0xff]
    %v469 = vld [vmem:[#allocation6 + $0xd8] sm:$0xff]
    %v470 = vld [vmem:[#allocation6 + $0xe0] sm:$0xff]
    %v471 = vld [vmem:[#allocation6 + $0xe8] sm:$0xff]
    %v472 = vld [vmem:[#allocation6 + $0xf0] sm:$0xff]
    %v473 = vld [vmem:[#allocation6 + $0xf8] sm:$0xff]
    %v474 = vpack.c.bf16 %v443, %v442
    %v475 = vpack.c.bf16 %v445, %v444
    %v476 = vpack.c.bf16 %v447, %v446
    %v477 = vpack.c.bf16 %v449, %v448
    %v478 = vpack.c.bf16 %v451, %v450
    %v479 = vpack.c.bf16 %v453, %v452
    %v480 = vpack.c.bf16 %v455, %v454
    %v481 = vpack.c.bf16 %v457, %v456
    %v482 = vpack.c.bf16 %v459, %v458
    %v483 = vpack.c.bf16 %v461, %v460
    %v484 = vpack.c.bf16 %v463, %v462
    %v485 = vpack.c.bf16 %v465, %v464
    %v486 = vpack.c.bf16 %v467, %v466
    %v487 = vpack.c.bf16 %v469, %v468
    %v488 = vpack.c.bf16 %v471, %v470
    %v489 = vpack.c.bf16 %v473, %v472
    %v490 = vld [vmem:[#allocation10] sm:$0xff]
    %v491 = vld [vmem:[#allocation10 + $0x8] sm:$0xff]
    %v492 = vld [vmem:[#allocation10 + $0x10] sm:$0xff]
    %v493 = vld [vmem:[#allocation10 + $0x18] sm:$0xff]
    %v494 = vld [vmem:[#allocation10 + $0x20] sm:$0xff]
    %v495 = vld [vmem:[#allocation10 + $0x28] sm:$0xff]
    %v496 = vld [vmem:[#allocation10 + $0x30] sm:$0xff]
    %v497 = vld [vmem:[#allocation10 + $0x38] sm:$0xff]
    %v498 = vld [vmem:[#allocation10 + $0x40] sm:$0xff]
    %v499 = vld [vmem:[#allocation10 + $0x48] sm:$0xff]
    %v500 = vld [vmem:[#allocation10 + $0x50] sm:$0xff]
    %v501 = vld [vmem:[#allocation10 + $0x58] sm:$0xff]
    %v502 = vld [vmem:[#allocation10 + $0x60] sm:$0xff]
    %v503 = vld [vmem:[#allocation10 + $0x68] sm:$0xff]
    %v504 = vld [vmem:[#allocation10 + $0x70] sm:$0xff]
    %v505 = vld [vmem:[#allocation10 + $0x78] sm:$0xff]
    %v506 = vpack.c.bf16 %v491, %v490
    %v507 = vpack.c.bf16 %v493, %v492
    %v508 = vpack.c.bf16 %v495, %v494
    %v509 = vpack.c.bf16 %v497, %v496
    %v510 = vpack.c.bf16 %v499, %v498
    %v511 = vpack.c.bf16 %v501, %v500
    %v512 = vpack.c.bf16 %v503, %v502
    %v513 = vpack.c.bf16 %v505, %v504
    %514 = vmatpush.bf16.msra.mxu0 %v513
    %515 = vmatpush.bf16.msra.mxu0 %v512
    %516 = vmatpush.bf16.msra.mxu0 %v511
    %517 = vmatpush.bf16.msra.mxu0 %v510
    %518 = vmatpush.bf16.msra.mxu0 %v509
    %519 = vmatpush.bf16.msra.mxu0 %v508
    %520 = vmatpush.bf16.msra.mxu0 %v507
    %521 = vmatpush.bf16.msra.mxu0 %v506
    %522 = vmatmul.bf16.gmra.mxu0 %v474
    %v523 = vpop.f32.mrf.mxu0
    %v524 = vadd.f32 0.0, %v523
    %v525 = vpop.f32.mrf.mxu0
    %v526 = vadd.f32 0.0, %v525
    %527 = vmatmul.bf16.gmra.mxu0 %v475
    %v528 = vpop.f32.mrf.mxu0
    %v529 = vadd.f32 0.0, %v528
    %v530 = vpop.f32.mrf.mxu0
    %v531 = vadd.f32 0.0, %v530
    %532 = vmatmul.bf16.gmra.mxu0 %v476
    %v533 = vpop.f32.mrf.mxu0
    %v534 = vadd.f32 0.0, %v533
    %v535 = vpop.f32.mrf.mxu0
    %v536 = vadd.f32 0.0, %v535
    %537 = vmatmul.bf16.gmra.mxu0 %v477
    %v538 = vpop.f32.mrf.mxu0
    %v539 = vadd.f32 0.0, %v538
    %v540 = vpop.f32.mrf.mxu0
    %v541 = vadd.f32 0.0, %v540
    %542 = vmatmul.bf16.gmra.mxu0 %v478
    %v543 = vpop.f32.mrf.mxu0
    %v544 = vadd.f32 0.0, %v543
    %v545 = vpop.f32.mrf.mxu0
    %v546 = vadd.f32 0.0, %v545
    %547 = vmatmul.bf16.gmra.mxu0 %v479
    %v548 = vpop.f32.mrf.mxu0
    %v549 = vadd.f32 0.0, %v548
    %v550 = vpop.f32.mrf.mxu0
    %v551 = vadd.f32 0.0, %v550
    %552 = vmatmul.bf16.gmra.mxu0 %v480
    %v553 = vpop.f32.mrf.mxu0
    %v554 = vadd.f32 0.0, %v553
    %v555 = vpop.f32.mrf.mxu0
    %v556 = vadd.f32 0.0, %v555
    %557 = vmatmul.bf16.gmra.mxu0 %v481
    %v558 = vpop.f32.mrf.mxu0
    %v559 = vadd.f32 0.0, %v558
    %v560 = vpop.f32.mrf.mxu0
    %v561 = vadd.f32 0.0, %v560
    %562 = vmatmul.bf16.gmra.mxu0 %v482
    %v563 = vpop.f32.mrf.mxu0
    %v564 = vadd.f32 0.0, %v563
    %v565 = vpop.f32.mrf.mxu0
    %v566 = vadd.f32 0.0, %v565
    %567 = vmatmul.bf16.gmra.mxu0 %v483
    %v568 = vpop.f32.mrf.mxu0
    %v569 = vadd.f32 0.0, %v568
    %v570 = vpop.f32.mrf.mxu0
    %v571 = vadd.f32 0.0, %v570
    %572 = vmatmul.bf16.gmra.mxu0 %v484
    %v573 = vpop.f32.mrf.mxu0
    %v574 = vadd.f32 0.0, %v573
    %v575 = vpop.f32.mrf.mxu0
    %v576 = vadd.f32 0.0, %v575
    %577 = vmatmul.bf16.gmra.mxu0 %v485
    %v578 = vpop.f32.mrf.mxu0
    %v579 = vadd.f32 0.0, %v578
    %v580 = vpop.f32.mrf.mxu0
    %v581 = vadd.f32 0.0, %v580
    %582 = vmatmul.bf16.gmra.mxu0 %v486
    %v583 = vpop.f32.mrf.mxu0
    %v584 = vadd.f32 0.0, %v583
    %v585 = vpop.f32.mrf.mxu0
    %v586 = vadd.f32 0.0, %v585
    %587 = vmatmul.bf16.gmra.mxu0 %v487
    %v588 = vpop.f32.mrf.mxu0
    %v589 = vadd.f32 0.0, %v588
    %v590 = vpop.f32.mrf.mxu0
    %v591 = vadd.f32 0.0, %v590
    %592 = vmatmul.bf16.gmra.mxu0 %v488
    %v593 = vpop.f32.mrf.mxu0
    %v594 = vadd.f32 0.0, %v593
    %v595 = vpop.f32.mrf.mxu0
    %v596 = vadd.f32 0.0, %v595
    %597 = vmatmul.bf16.gmra.mxu0 %v489
    %v598 = vpop.f32.mrf.mxu0
    %v599 = vadd.f32 0.0, %v598
    %v600 = vpop.f32.mrf.mxu0
    %v601 = vadd.f32 0.0, %v600
    %602 = vdwg.mxu0
    %v603 = vld [vmem:[%s6] sm:$0x7]
    %v605 = vperm.slane %v603, 0
    %v606 = vperm.slane %v603, 1
    %v607 = vperm.slane %v603, 2
    %v611 = vadd.f32 %v202, %v605
    %v612 = vadd.f32 %v363, %v606
    %v613 = vadd.f32 %v524, %v607
    %v614 = vadd.f32 %v204, %v605
    %v615 = vadd.f32 %v365, %v606
    %v616 = vadd.f32 %v526, %v607
    %v617 = vadd.f32 %v207, %v605
    %v618 = vadd.f32 %v368, %v606
    %v619 = vadd.f32 %v529, %v607
    %v620 = vadd.f32 %v209, %v605
    %v621 = vadd.f32 %v370, %v606
    %v622 = vadd.f32 %v531, %v607
    %v623 = vadd.f32 %v212, %v605
    %v624 = vadd.f32 %v373, %v606
    %v625 = vadd.f32 %v534, %v607
    %v626 = vadd.f32 %v214, %v605
    %v627 = vadd.f32 %v375, %v606
    %v628 = vadd.f32 %v536, %v607
    %v629 = vadd.f32 %v217, %v605
    %v630 = vadd.f32 %v378, %v606
    %v631 = vadd.f32 %v539, %v607
    %v632 = vadd.f32 %v219, %v605
    %v633 = vadd.f32 %v380, %v606
    %v634 = vadd.f32 %v541, %v607
    %v635 = vadd.f32 %v222, %v605
    %v636 = vadd.f32 %v383, %v606
    %v637 = vadd.f32 %v544, %v607
    %v638 = vadd.f32 %v224, %v605
    %v639 = vadd.f32 %v385, %v606
    %v640 = vadd.f32 %v546, %v607
    %v641 = vadd.f32 %v227, %v605
    %v642 = vadd.f32 %v388, %v606
    %v643 = vadd.f32 %v549, %v607
    %v644 = vadd.f32 %v229, %v605
    %v645 = vadd.f32 %v390, %v606
    %v646 = vadd.f32 %v551, %v607
    %v647 = vadd.f32 %v232, %v605
    %v648 = vadd.f32 %v393, %v606
    %v649 = vadd.f32 %v554, %v607
    %v650 = vadd.f32 %v234, %v605
    %v651 = vadd.f32 %v395, %v606
    %v652 = vadd.f32 %v556, %v607
    %v653 = vadd.f32 %v237, %v605
    %v654 = vadd.f32 %v398, %v606
    %v655 = vadd.f32 %v559, %v607
    %v656 = vadd.f32 %v239, %v605
    %v657 = vadd.f32 %v400, %v606
    %v658 = vadd.f32 %v561, %v607
    %v659 = vadd.f32 %v242, %v605
    %v660 = vadd.f32 %v403, %v606
    %v661 = vadd.f32 %v564, %v607
    %v662 = vadd.f32 %v244, %v605
    %v663 = vadd.f32 %v405, %v606
    %v664 = vadd.f32 %v566, %v607
    %v665 = vadd.f32 %v247, %v605
    %v666 = vadd.f32 %v408, %v606
    %v667 = vadd.f32 %v569, %v607
    %v668 = vadd.f32 %v249, %v605
    %v669 = vadd.f32 %v410, %v606
    %v670 = vadd.f32 %v571, %v607
    %v671 = vadd.f32 %v252, %v605
    %v672 = vadd.f32 %v413, %v606
    %v673 = vadd.f32 %v574, %v607
    %v674 = vadd.f32 %v254, %v605
    %v675 = vadd.f32 %v415, %v606
    %v676 = vadd.f32 %v576, %v607
    %v677 = vadd.f32 %v257, %v605
    %v678 = vadd.f32 %v418, %v606
    %v679 = vadd.f32 %v579, %v607
    %v680 = vadd.f32 %v259, %v605
    %v681 = vadd.f32 %v420, %v606
    %v682 = vadd.f32 %v581, %v607
    %v683 = vadd.f32 %v262, %v605
    %v684 = vadd.f32 %v423, %v606
    %v685 = vadd.f32 %v584, %v607
    %v686 = vadd.f32 %v264, %v605
    %v687 = vadd.f32 %v425, %v606
    %v688 = vadd.f32 %v586, %v607
    %v689 = vadd.f32 %v267, %v605
    %v690 = vadd.f32 %v428, %v606
    %v691 = vadd.f32 %v589, %v607
    %v692 = vadd.f32 %v269, %v605
    %v693 = vadd.f32 %v430, %v606
    %v694 = vadd.f32 %v591, %v607
    %v695 = vadd.f32 %v272, %v605
    %v696 = vadd.f32 %v433, %v606
    %v697 = vadd.f32 %v594, %v607
    %v698 = vadd.f32 %v274, %v605
    %v699 = vadd.f32 %v435, %v606
    %v700 = vadd.f32 %v596, %v607
    %v701 = vadd.f32 %v277, %v605
    %v702 = vadd.f32 %v438, %v606
    %v703 = vadd.f32 %v599, %v607
    %v704 = vadd.f32 %v279, %v605
    %v705 = vadd.f32 %v440, %v606
    %v706 = vadd.f32 %v601, %v607
    %707 = vst [vmem:[%s7] sm:$0xff] %v611
    %708 = vst [vmem:[%s7 + $0x8] sm:$0xff] %v612
    %709 = vst [vmem:[%s7 + $0x10] sm:$0xff] %v613
    %710 = vst [vmem:[%s7 + $0x18] sm:$0xff] %v614
    %711 = vst [vmem:[%s7 + $0x20] sm:$0xff] %v615
    %712 = vst [vmem:[%s7 + $0x28] sm:$0xff] %v616
    %713 = vst [vmem:[%s7 + $0x30] sm:$0xff] %v617
    %714 = vst [vmem:[%s7 + $0x38] sm:$0xff] %v618
    %715 = vst [vmem:[%s7 + $0x40] sm:$0xff] %v619
    %716 = vst [vmem:[%s7 + $0x48] sm:$0xff] %v620
    %717 = vst [vmem:[%s7 + $0x50] sm:$0xff] %v621
    %718 = vst [vmem:[%s7 + $0x58] sm:$0xff] %v622
    %719 = vst [vmem:[%s7 + $0x60] sm:$0xff] %v623
    %720 = vst [vmem:[%s7 + $0x68] sm:$0xff] %v624
    %721 = vst [vmem:[%s7 + $0x70] sm:$0xff] %v625
    %722 = vst [vmem:[%s7 + $0x78] sm:$0xff] %v626
    %723 = vst [vmem:[%s7 + $0x80] sm:$0xff] %v627
    %724 = vst [vmem:[%s7 + $0x88] sm:$0xff] %v628
    %725 = vst [vmem:[%s7 + $0x90] sm:$0xff] %v629
    %726 = vst [vmem:[%s7 + $0x98] sm:$0xff] %v630
    %727 = vst [vmem:[%s7 + $0xa0] sm:$0xff] %v631
    %728 = vst [vmem:[%s7 + $0xa8] sm:$0xff] %v632
    %729 = vst [vmem:[%s7 + $0xb0] sm:$0xff] %v633
    %730 = vst [vmem:[%s7 + $0xb8] sm:$0xff] %v634
    %731 = vst [vmem:[%s7 + $0xc0] sm:$0xff] %v635
    %732 = vst [vmem:[%s7 + $0xc8] sm:$0xff] %v636
    %733 = vst [vmem:[%s7 + $0xd0] sm:$0xff] %v637
    %734 = vst [vmem:[%s7 + $0xd8] sm:$0xff] %v638
    %735 = vst [vmem:[%s7 + $0xe0] sm:$0xff] %v639
    %736 = vst [vmem:[%s7 + $0xe8] sm:$0xff] %v640
    %737 = vst [vmem:[%s7 + $0xf0] sm:$0xff] %v641
    %738 = vst [vmem:[%s7 + $0xf8] sm:$0xff] %v642
    %739 = vst [vmem:[%s7 + $0x100] sm:$0xff] %v643
    %740 = vst [vmem:[%s7 + $0x108] sm:$0xff] %v644
    %741 = vst [vmem:[%s7 + $0x110] sm:$0xff] %v645
    %742 = vst [vmem:[%s7 + $0x118] sm:$0xff] %v646
    %743 = vst [vmem:[%s7 + $0x120] sm:$0xff] %v647
    %744 = vst [vmem:[%s7 + $0x128] sm:$0xff] %v648
    %745 = vst [vmem:[%s7 + $0x130] sm:$0xff] %v649
    %746 = vst [vmem:[%s7 + $0x138] sm:$0xff] %v650
    %747 = vst [vmem:[%s7 + $0x140] sm:$0xff] %v651
    %748 = vst [vmem:[%s7 + $0x148] sm:$0xff] %v652
    %749 = vst [vmem:[%s7 + $0x150] sm:$0xff] %v653
    %750 = vst [vmem:[%s7 + $0x158] sm:$0xff] %v654
    %751 = vst [vmem:[%s7 + $0x160] sm:$0xff] %v655
    %752 = vst [vmem:[%s7 + $0x168] sm:$0xff] %v656
    %753 = vst [vmem:[%s7 + $0x170] sm:$0xff] %v657
    %754 = vst [vmem:[%s7 + $0x178] sm:$0xff] %v658
    %755 = vst [vmem:[%s7 + $0x180] sm:$0xff] %v659
    %756 = vst [vmem:[%s7 + $0x188] sm:$0xff] %v660
    %757 = vst [vmem:[%s7 + $0x190] sm:$0xff] %v661
    %758 = vst [vmem:[%s7 + $0x198] sm:$0xff] %v662
    %759 = vst [vmem:[%s7 + $0x1a0] sm:$0xff] %v663
    %760 = vst [vmem:[%s7 + $0x1a8] sm:$0xff] %v664
    %761 = vst [vmem:[%s7 + $0x1b0] sm:$0xff] %v665
    %762 = vst [vmem:[%s7 + $0x1b8] sm:$0xff] %v666
    %763 = vst [vmem:[%s7 + $0x1c0] sm:$0xff] %v667
    %764 = vst [vmem:[%s7 + $0x1c8] sm:$0xff] %v668
    %765 = vst [vmem:[%s7 + $0x1d0] sm:$0xff] %v669
    %766 = vst [vmem:[%s7 + $0x1d8] sm:$0xff] %v670
    %767 = vst [vmem:[%s7 + $0x1e0] sm:$0xff] %v671
    %768 = vst [vmem:[%s7 + $0x1e8] sm:$0xff] %v672
    %769 = vst [vmem:[%s7 + $0x1f0] sm:$0xff] %v673
    %770 = vst [vmem:[%s7 + $0x1f8] sm:$0xff] %v674
    %771 = vst [vmem:[%s7 + $0x200] sm:$0xff] %v675
    %772 = vst [vmem:[%s7 + $0x208] sm:$0xff] %v676
    %773 = vst [vmem:[%s7 + $0x210] sm:$0xff] %v677
    %774 = vst [vmem:[%s7 + $0x218] sm:$0xff] %v678
    %775 = vst [vmem:[%s7 + $0x220] sm:$0xff] %v679
    %776 = vst [vmem:[%s7 + $0x228] sm:$0xff] %v680
    %777 = vst [vmem:[%s7 + $0x230] sm:$0xff] %v681
    %778 = vst [vmem:[%s7 + $0x238] sm:$0xff] %v682
    %779 = vst [vmem:[%s7 + $0x240] sm:$0xff] %v683
    %780 = vst [vmem:[%s7 + $0x248] sm:$0xff] %v684
    %781 = vst [vmem:[%s7 + $0x250] sm:$0xff] %v685
    %782 = vst [vmem:[%s7 + $0x258] sm:$0xff] %v686
    %783 = vst [vmem:[%s7 + $0x260] sm:$0xff] %v687
    %784 = vst [vmem:[%s7 + $0x268] sm:$0xff] %v688
    %785 = vst [vmem:[%s7 + $0x270] sm:$0xff] %v689
    %786 = vst [vmem:[%s7 + $0x278] sm:$0xff] %v690
    %787 = vst [vmem:[%s7 + $0x280] sm:$0xff] %v691
    %788 = vst [vmem:[%s7 + $0x288] sm:$0xff] %v692
    %789 = vst [vmem:[%s7 + $0x290] sm:$0xff] %v693
    %790 = vst [vmem:[%s7 + $0x298] sm:$0xff] %v694
    %791 = vst [vmem:[%s7 + $0x2a0] sm:$0xff] %v695
    %792 = vst [vmem:[%s7 + $0x2a8] sm:$0xff] %v696
    %793 = vst [vmem:[%s7 + $0x2b0] sm:$0xff] %v697
    %794 = vst [vmem:[%s7 + $0x2b8] sm:$0xff] %v698
    %795 = vst [vmem:[%s7 + $0x2c0] sm:$0xff] %v699
    %796 = vst [vmem:[%s7 + $0x2c8] sm:$0xff] %v700
    %797 = vst [vmem:[%s7 + $0x2d0] sm:$0xff] %v701
    %798 = vst [vmem:[%s7 + $0x2d8] sm:$0xff] %v702
    %799 = vst [vmem:[%s7 + $0x2e0] sm:$0xff] %v703
    %800 = vst [vmem:[%s7 + $0x2e8] sm:$0xff] %v704
    %801 = vst [vmem:[%s7 + $0x2f0] sm:$0xff] %v705
    %802 = vst [vmem:[%s7 + $0x2f8] sm:$0xff] %v706
    // Predicated region
    $region54: #{elastic_mha_forward.3} parent=1 // pred_check
      _
    $region55: #{elastic_mha_forward.3} parent=1 // pred_check_branch
      %804 = sbr.rel (0) target = $region57
    $region56: #{elastic_mha_forward.3} parent=1 // pred_region
      _
    $region57: #{elastic_mha_forward.3} parent=1 // pred_fallthru
      _
    // Predicated region
    $region58: #{elastic_mha_forward.3} parent=1 // pred_check
      _
    $region59: #{elastic_mha_forward.3} parent=1 // pred_check_branch
      %806 = sbr.rel (0) target = $region61
    $region60: #{elastic_mha_forward.3} parent=1 // pred_region
      _
    $region61: #{elastic_mha_forward.3} parent=1 // pred_fallthru
      _
    %807 = vsyncpa [#allocation3], 1
    %808 = vsyncpa [#allocation5], 1
    %809 = vsyncpa [#allocation8], 1
    %810 = vsyncpa [#allocation11], 1

// kernel: elastic_mha_forward.4
$region0: #{elastic_mha_forward.4}
  #allocation0 [shape = 'u32[]', space=smem, size = 0x4, offset = 0x4, fixed_abs, tag = 'smem constant byte address 0x4 - core index']
  #allocation1 [shape = 'u32[72,128]{1,0:T(1,128)}', space=vmem, size = 0x9000, scoped, tag = 'internal scratch']
  %s0 = inlined_call_operand.vmem [shape: f32[2,128,384], index: 0, kind: input, shape index: {}]
  %s1 = inlined_call_operand.vmem [shape: f32[2,128,128], index: 1, kind: output, shape index: {}]
  %s2 = sld [smem:[#allocation0]]
  $region37: #{elastic_mha_forward.4} parent=0
    _
  %s4 = ssub.s32 1, %s2
  %s5 = scalar_select 0, %s4, %s2
  loop: start=0, step=1, limit=4
  $region2: #{elastic_mha_forward.4} parent=0 // loop_pre_header
    _
  $region3: #{elastic_mha_forward.4} parent=0 // loop_header
    %s7 = sphi 0, %s11
    %p8 = scmp.ge.s32.totalorder %s7, 4
    %s17 = sphi 0, %s19
    %s20 = sphi 0, %s17
    %s21 = sphi 0, %s20
    %s37 = sphi 0, %s21
    %s43 = sphi 0, %s45
    %s46 = sphi 0, %s43
    %s47 = sphi 0, %s46
    %s63 = sphi 0, %s47
  $region4: #{elastic_mha_forward.4} parent=0 // loop_header_branch
    %10 = sbr.rel (%p8) target = $region8
  $region5: #{elastic_mha_forward.4} parent=0 // loop_body
    %s12 = ssub.s32 %s7, 1
    %s13 = ssub.s32 %s7, 2
    %s14 = sadd.s32 %s7, 1
    %s15 = ssub.s32 %s7, %s14
    %p16 = scmp.eq.s32.totalorder %s15, 0
    %s18 = sadd.s32 %s17, 1
    %s19 = scalar_select %p16, %s17, %s18
    %p22 = pneg %p16
    %p23 = scmp.eq.s32.totalorder %s7, 1
    %p24 = por %p22, %p23
    %p25 = scmp.ne.s32.totalorder %s17, %s20
    %p26 = scmp.eq.s32.totalorder %s7, 0
    %p27 = por %p25, %p26
    %p28 = scmp.ne.s32.totalorder %s17, %s20
    %p29 = scmp.eq.s32.totalorder %s12, 1
    %p30 = por %p28, %p29
    %p31 = scmp.ne.s32.totalorder %s20, %s21
    %p32 = scmp.eq.s32.totalorder %s12, 0
    %p33 = por %p31, %p32
    %p34 = scmp.ne.s32.totalorder %s20, %s21
    %p35 = scmp.eq.s32.totalorder %s13, 1
    %p36 = por %p34, %p35
    %p38 = scmp.ne.s32.totalorder %s21, %s37
    %p39 = scmp.eq.s32.totalorder %s13, 0
    %p40 = por %p38, %p39
    %s41 = ssub.s32 %s7, %s14
    %p42 = scmp.eq.s32.totalorder %s41, 0
    %s44 = sadd.s32 %s43, 1
    %s45 = scalar_select %p42, %s43, %s44
    %p48 = pneg %p42
    %p49 = scmp.eq.s32.totalorder %s7, 1
    %p50 = por %p48, %p49
    %p51 = scmp.ne.s32.totalorder %s43, %s46
    %p52 = scmp.eq.s32.totalorder %s7, 0
    %p53 = por %p51, %p52
    %p54 = scmp.ne.s32.totalorder %s43, %s46
    %p55 = scmp.eq.s32.totalorder %s12, 1
    %p56 = por %p54, %p55
    %p57 = scmp.ne.s32.totalorder %s46, %s47
    %p58 = scmp.eq.s32.totalorder %s12, 0
    %p59 = por %p57, %p58
    %p60 = scmp.ne.s32.totalorder %s46, %s47
    %p61 = scmp.eq.s32.totalorder %s13, 1
    %p62 = por %p60, %p61
    %p64 = scmp.ne.s32.totalorder %s47, %s63
    %p65 = scmp.eq.s32.totalorder %s13, 0
    %p66 = por %p64, %p65
    %p67 = scmp.le.s32.totalorder 1, %s7
    %p68 = scmp.lt.s32.totalorder %s7, 3
    %p69 = pnand %p67, %p68
    %p70 = pneg %p69
    // Predicated region
    $region9: #{elastic_mha_forward.4} parent=5 // pred_check
      _
    $region10: #{elastic_mha_forward.4} parent=5 // pred_check_branch
      %72 = sbr.rel (%p69) target = $region12
    $region11: #{elastic_mha_forward.4} parent=5 // pred_region
      %s73 = ssub.s32 %s7, 1
    $region12: #{elastic_mha_forward.4} parent=5 // pred_fallthru
      _
    %p74 = scmp.lt.s32.totalorder %s7, 2
    // Predicated region
    $region13: #{elastic_mha_forward.4} parent=5 // pred_check
      %p75 = pneg %p74
    $region14: #{elastic_mha_forward.4} parent=5 // pred_check_branch
      %77 = sbr.rel (%p75) target = $region16
    $region15: #{elastic_mha_forward.4} parent=5 // pred_region
      // Predicated region
      $region17: #{elastic_mha_forward.4} parent=15 // pred_check
        %p78 = pneg %p27
      $region18: #{elastic_mha_forward.4} parent=15 // pred_check_branch
        %80 = sbr.rel (%p78) target = $region20
      $region19: #{elastic_mha_forward.4} parent=15 // pred_region
        %p81 = scmp.lt.s32.totalorder %s7, 1
        %s82 = scalar_select %p81, %s7, 1
        %s83 = smul.addr %s82, 48
        %s84 = smul.addr %s83, 8
        %s85 = scalar_lea.vmem %s0, %s84
      $region20: #{elastic_mha_forward.4} parent=15 // pred_fallthru
        _
    $region16: #{elastic_mha_forward.4} parent=5 // pred_fallthru
      _
    %p86 = scmp.le.s32.totalorder 1, %s7
    %p87 = scmp.lt.s32.totalorder %s7, 3
    %p88 = pnand %p86, %p87
    %p89 = pneg %p88
    // Predicated region
    $region21: #{elastic_mha_forward.4} parent=5 // pred_check
      _
    $region22: #{elastic_mha_forward.4} parent=5 // pred_check_branch
      %91 = sbr.rel (%p88) target = $region24
    $region23: #{elastic_mha_forward.4} parent=5 // pred_region
      %s92 = ssub.s32 %s7, 1
      %p93 = scmp.lt.s32.totalorder %s12, 1
      %s94 = scalar_select %p93, %s12, 1
      %s95 = smul.addr %s94, 48
      %s96 = smul.addr %s95, 8
      %s97 = scalar_lea.vmem %s0, %s96
      %p98 = pneg %p33
      %p99 = pneg %p30
      %p100 = pneg %p59
      %p101 = pneg %p56
      %p102 = scmp.lt.s32.totalorder %s12, 1
      %s103 = scalar_select %p102, %s12, 1
      %s104 = smul.addr %s103, 16
      %s105 = smul.addr %s104, 8
      %s106 = scalar_lea.vmem %s1, %s105
      %p107 = scmp.lt.s32.totalorder %s12, 1
      %s108 = scalar_select %p107, %s12, 1
      %s109 = smul.addr %s108, 48
      %s110 = smul.addr %s109, 8
      %s111 = scalar_lea.vmem %s0, %s110
      %p112 = scmp.lt.s32.totalorder %s12, 1
      %s113 = scalar_select %p112, %s12, 1
      %s114 = smul.addr %s113, 16
      %s115 = smul.addr %s114, 8
      %s116 = scalar_lea.vmem %s1, %s115
      %v117 = vld [vmem:[%s111] sm:$0xff]
      %v118 = vld [vmem:[%s111 + $0x8] sm:$0xff]
      %v119 = vld [vmem:[%s111 + $0x10] sm:$0xff]
      %v120 = vld [vmem:[%s111 + $0x18] sm:$0xff]
      %v121 = vld [vmem:[%s111 + $0x20] sm:$0xff]
      %v122 = vld [vmem:[%s111 + $0x28] sm:$0xff]
      %v123 = vld [vmem:[%s111 + $0x30] sm:$0xff]
      %v124 = vld [vmem:[%s111 + $0x38] sm:$0xff]
      %v125 = vld [vmem:[%s111 + $0x40] sm:$0xff]
      %v126 = vld [vmem:[%s111 + $0x48] sm:$0xff]
      %v127 = vld [vmem:[%s111 + $0x50] sm:$0xff]
      %v128 = vld [vmem:[%s111 + $0x58] sm:$0xff]
      %v129 = vld [vmem:[%s111 + $0x60] sm:$0xff]
      %v130 = vld [vmem:[%s111 + $0x68] sm:$0xff]
      %v131 = vld [vmem:[%s111 + $0x70] sm:$0xff]
      %v132 = vld [vmem:[%s111 + $0x78] sm:$0xff]
      %v133 = vld [vmem:[%s111 + $0x80] sm:$0xff]
      %v134 = vld [vmem:[%s111 + $0x88] sm:$0xff]
      %v135 = vld [vmem:[%s111 + $0x90] sm:$0xff]
      %v136 = vld [vmem:[%s111 + $0x98] sm:$0xff]
      %v137 = vld [vmem:[%s111 + $0xa0] sm:$0xff]
      %v138 = vld [vmem:[%s111 + $0xa8] sm:$0xff]
      %v139 = vld [vmem:[%s111 + $0xb0] sm:$0xff]
      %v140 = vld [vmem:[%s111 + $0xb8] sm:$0xff]
      %v141 = vld [vmem:[%s111 + $0xc0] sm:$0xff]
      %v142 = vld [vmem:[%s111 + $0xc8] sm:$0xff]
      %v143 = vld [vmem:[%s111 + $0xd0] sm:$0xff]
      %v144 = vld [vmem:[%s111 + $0xd8] sm:$0xff]
      %v145 = vld [vmem:[%s111 + $0xe0] sm:$0xff]
      %v146 = vld [vmem:[%s111 + $0xe8] sm:$0xff]
      %v147 = vld [vmem:[%s111 + $0xf0] sm:$0xff]
      %v148 = vld [vmem:[%s111 + $0xf8] sm:$0xff]
      %v149 = vld [vmem:[%s111 + $0x100] sm:$0xff]
      %v150 = vld [vmem:[%s111 + $0x108] sm:$0xff]
      %v151 = vld [vmem:[%s111 + $0x110] sm:$0xff]
      %v152 = vld [vmem:[%s111 + $0x118] sm:$0xff]
      %v153 = vld [vmem:[%s111 + $0x120] sm:$0xff]
      %v154 = vld [vmem:[%s111 + $0x128] sm:$0xff]
      %v155 = vld [vmem:[%s111 + $0x130] sm:$0xff]
      %v156 = vld [vmem:[%s111 + $0x138] sm:$0xff]
      %v157 = vld [vmem:[%s111 + $0x140] sm:$0xff]
      %v158 = vld [vmem:[%s111 + $0x148] sm:$0xff]
      %v159 = vld [vmem:[%s111 + $0x150] sm:$0xff]
      %v160 = vld [vmem:[%s111 + $0x158] sm:$0xff]
      %v161 = vld [vmem:[%s111 + $0x160] sm:$0xff]
      %v162 = vld [vmem:[%s111 + $0x168] sm:$0xff]
      %v163 = vld [vmem:[%s111 + $0x170] sm:$0xff]
      %v164 = vld [vmem:[%s111 + $0x178] sm:$0xff]
      %v165 = vmul.f32 %v117, 0.125
      %v166 = vmul.f32 %v120, 0.125
      %v167 = vmul.f32 %v123, 0.125
      %v168 = vmul.f32 %v126, 0.125
      %v169 = vmul.f32 %v129, 0.125
      %v170 = vmul.f32 %v132, 0.125
      %v171 = vmul.f32 %v135, 0.125
      %v172 = vmul.f32 %v138, 0.125
      %v173 = vmul.f32 %v141, 0.125
      %v174 = vmul.f32 %v144, 0.125
      %v175 = vmul.f32 %v147, 0.125
      %v176 = vmul.f32 %v150, 0.125
      %v177 = vmul.f32 %v153, 0.125
      %v178 = vmul.f32 %v156, 0.125
      %v179 = vmul.f32 %v159, 0.125
      %v180 = vmul.f32 %v162, 0.125
      %v181 = vpack.c.bf16 %v166, %v165
      %v182 = vpack.c.bf16 %v168, %v167
      %v183 = vpack.c.bf16 %v170, %v169
      %v184 = vpack.c.bf16 %v172, %v171
      %v185 = vpack.c.bf16 %v174, %v173
      %v186 = vpack.c.bf16 %v176, %v175
      %v187 = vpack.c.bf16 %v178, %v177
      %v188 = vpack.c.bf16 %v180, %v179
      %v189 = vpack.c.bf16 %v121, %v118
      %v190 = vpack.c.bf16 %v127, %v124
      %v191 = vpack.c.bf16 %v133, %v130
      %v192 = vpack.c.bf16 %v139, %v136
      %v193 = vpack.c.bf16 %v145, %v142
      %v194 = vpack.c.bf16 %v151, %v148
      %v195 = vpack.c.bf16 %v157, %v154
      %v196 = vpack.c.bf16 %v163, %v160
      %vm197 = vcmask 523264
      %v199 = vsel %vm197, %v181, 0
      %v202 = vsel %vm197, %v182, 0
      %v205 = vsel %vm197, %v183, 0
      %v208 = vsel %vm197, %v184, 0
      %v211 = vsel %vm197, %v185, 0
      %v214 = vsel %vm197, %v186, 0
      %v217 = vsel %vm197, %v187, 0
      %v220 = vsel %vm197, %v188, 0
      %v223 = vsel %vm197, %v189, 0
      %v226 = vsel %vm197, %v190, 0
      %v229 = vsel %vm197, %v191, 0
      %v232 = vsel %vm197, %v192, 0
      %v235 = vsel %vm197, %v193, 0
      %v238 = vsel %vm197, %v194, 0
      %v241 = vsel %vm197, %v195, 0
      %v244 = vsel %vm197, %v196, 0
      %246 = vmatpush.bf16.xpose.msra.mxu0 %v244
      %247 = vmatpush.bf16.xpose.msra.mxu0 %v241
      %248 = vmatpush.bf16.xpose.msra.mxu0 %v238
      %249 = vmatpush.bf16.xpose.msra.mxu0 %v235
      %250 = vmatpush.bf16.xpose.msra.mxu0 %v232
      %251 = vmatpush.bf16.xpose.msra.mxu0 %v229
      %252 = vmatpush.bf16.xpose.msra.mxu0 %v226
      %253 = vmatpush.bf16.xpose.msra.mxu0 %v223
      %254 = vmatmul.bf16.gmra.mxu0 %v199
      %v255 = vpop.f32.mrf.mxu0
      %v256 = vadd.f32 0.0, %v255
      %v257 = vpop.f32.mrf.mxu0
      %v258 = vadd.f32 0.0, %v257
      %259 = vmatmul.bf16.gmra.mxu0 %v202
      %v260 = vpop.f32.mrf.mxu0
      %v261 = vadd.f32 0.0, %v260
      %v262 = vpop.f32.mrf.mxu0
      %v263 = vadd.f32 0.0, %v262
      %264 = vmatmul.bf16.gmra.mxu0 %v205
      %v265 = vpop.f32.mrf.mxu0
      %v266 = vadd.f32 0.0, %v265
      %v267 = vpop.f32.mrf.mxu0
      %v268 = vadd.f32 0.0, %v267
      %269 = vmatmul.bf16.gmra.mxu0 %v208
      %v270 = vpop.f32.mrf.mxu0
      %v271 = vadd.f32 0.0, %v270
      %v272 = vpop.f32.mrf.mxu0
      %v273 = vadd.f32 0.0, %v272
      %274 = vmatmul.bf16.gmra.mxu0 %v211
      %v275 = vpop.f32.mrf.mxu0
      %v276 = vadd.f32 0.0, %v275
      %v277 = vpop.f32.mrf.mxu0
      %v278 = vadd.f32 0.0, %v277
      %279 = vmatmul.bf16.gmra.mxu0 %v214
      %v280 = vpop.f32.mrf.mxu0
      %v281 = vadd.f32 0.0, %v280
      %v282 = vpop.f32.mrf.mxu0
      %v283 = vadd.f32 0.0, %v282
      %284 = vmatmul.bf16.gmra.mxu0 %v217
      %v285 = vpop.f32.mrf.mxu0
      %v286 = vadd.f32 0.0, %v285
      %v287 = vpop.f32.mrf.mxu0
      %v288 = vadd.f32 0.0, %v287
      %289 = vmatmul.bf16.gmra.mxu0 %v220
      %v290 = vpop.f32.mrf.mxu0
      %v291 = vadd.f32 0.0, %v290
      %v292 = vpop.f32.mrf.mxu0
      %v293 = vadd.f32 0.0, %v292
      %294 = vdwg.mxu0
      %295 = vmax.xlane.f32.xlu0 %v256
      %v296 = vpop.xlane.xlu0 %295
      %297 = vmax.xlane.f32.xlu0 %v258
      %v298 = vpop.xlane.xlu0 %297
      %299 = vmax.xlane.f32.xlu0 %v261
      %v300 = vpop.xlane.xlu0 %299
      %301 = vmax.xlane.f32.xlu0 %v263
      %v302 = vpop.xlane.xlu0 %301
      %303 = vmax.xlane.f32.xlu0 %v266
      %v304 = vpop.xlane.xlu0 %303
      %305 = vmax.xlane.f32.xlu0 %v268
      %v306 = vpop.xlane.xlu0 %305
      %307 = vmax.xlane.f32.xlu0 %v271
      %v308 = vpop.xlane.xlu0 %307
      %309 = vmax.xlane.f32.xlu0 %v273
      %v310 = vpop.xlane.xlu0 %309
      %311 = vmax.xlane.f32.xlu0 %v276
      %v312 = vpop.xlane.xlu0 %311
      %313 = vmax.xlane.f32.xlu0 %v278
      %v314 = vpop.xlane.xlu0 %313
      %315 = vmax.xlane.f32.xlu0 %v281
      %v316 = vpop.xlane.xlu0 %315
      %317 = vmax.xlane.f32.xlu0 %v283
      %v318 = vpop.xlane.xlu0 %317
      %319 = vmax.xlane.f32.xlu0 %v286
      %v320 = vpop.xlane.xlu0 %319
      %321 = vmax.xlane.f32.xlu0 %v288
      %v322 = vpop.xlane.xlu0 %321
      %323 = vmax.xlane.f32.xlu0 %v291
      %v324 = vpop.xlane.xlu0 %323
      %325 = vmax.xlane.f32.xlu0 %v293
      %v326 = vpop.xlane.xlu0 %325
      %v327 = vsub.f32 %v256, %v296
      %v328 = vsub.f32 %v258, %v298
      %v329 = vsub.f32 %v261, %v300
      %v330 = vsub.f32 %v263, %v302
      %v331 = vsub.f32 %v266, %v304
      %v332 = vsub.f32 %v268, %v306
      %v333 = vsub.f32 %v271, %v308
      %v334 = vsub.f32 %v273, %v310
      %v335 = vsub.f32 %v276, %v312
      %v336 = vsub.f32 %v278, %v314
      %v337 = vsub.f32 %v281, %v316
      %v338 = vsub.f32 %v283, %v318
      %v339 = vsub.f32 %v286, %v320
      %v340 = vsub.f32 %v288, %v322
      %v341 = vsub.f32 %v291, %v324
      %v342 = vsub.f32 %v293, %v326
      %v343 = vmul.f32 %v327, 1.442695
      %v344 = vpow.pop %v343
      %v345 = vmul.f32 %v328, 1.442695
      %v346 = vpow.pop %v345
      %v347 = vmul.f32 %v329, 1.442695
      %v348 = vpow.pop %v347
      %v349 = vmul.f32 %v330, 1.442695
      %v350 = vpow.pop %v349
      %v351 = vmul.f32 %v331, 1.442695
      %v352 = vpow.pop %v351
      %v353 = vmul.f32 %v332, 1.442695
      %v354 = vpow.pop %v353
      %v355 = vmul.f32 %v333, 1.442695
      %v356 = vpow.pop %v355
      %v357 = vmul.f32 %v334, 1.442695
      %v358 = vpow.pop %v357
      %v359 = vmul.f32 %v335, 1.442695
      %v360 = vpow.pop %v359
      %v361 = vmul.f32 %v336, 1.442695
      %v362 = vpow.pop %v361
      %v363 = vmul.f32 %v337, 1.442695
      %v364 = vpow.pop %v363
      %v365 = vmul.f32 %v338, 1.442695
      %v366 = vpow.pop %v365
      %v367 = vmul.f32 %v339, 1.442695
      %v368 = vpow.pop %v367
      %v369 = vmul.f32 %v340, 1.442695
      %v370 = vpow.pop %v369
      %v371 = vmul.f32 %v341, 1.442695
      %v372 = vpow.pop %v371
      %v373 = vmul.f32 %v342, 1.442695
      %v374 = vpow.pop %v373
      %375 = vadd.xlane.f32.xlu0 %v344
      %v376 = vpop.xlane.xlu0 %375
      %377 = vadd.xlane.f32.xlu0 %v346
      %v378 = vpop.xlane.xlu0 %377
      %379 = vadd.xlane.f32.xlu0 %v348
      %v380 = vpop.xlane.xlu0 %379
      %381 = vadd.xlane.f32.xlu0 %v350
      %v382 = vpop.xlane.xlu0 %381
      %383 = vadd.xlane.f32.xlu0 %v352
      %v384 = vpop.xlane.xlu0 %383
      %385 = vadd.xlane.f32.xlu0 %v354
      %v386 = vpop.xlane.xlu0 %385
      %387 = vadd.xlane.f32.xlu0 %v356
      %v388 = vpop.xlane.xlu0 %387
      %389 = vadd.xlane.f32.xlu0 %v358
      %v390 = vpop.xlane.xlu0 %389
      %391 = vadd.xlane.f32.xlu0 %v360
      %v392 = vpop.xlane.xlu0 %391
      %393 = vadd.xlane.f32.xlu0 %v362
      %v394 = vpop.xlane.xlu0 %393
      %395 = vadd.xlane.f32.xlu0 %v364
      %v396 = vpop.xlane.xlu0 %395
      %397 = vadd.xlane.f32.xlu0 %v366
      %v398 = vpop.xlane.xlu0 %397
      %399 = vadd.xlane.f32.xlu0 %v368
      %v400 = vpop.xlane.xlu0 %399
      %401 = vadd.xlane.f32.xlu0 %v370
      %v402 = vpop.xlane.xlu0 %401
      %403 = vadd.xlane.f32.xlu0 %v372
      %v404 = vpop.xlane.xlu0 %403
      %405 = vadd.xlane.f32.xlu0 %v374
      %v406 = vpop.xlane.xlu0 %405
      %v407 = vrcp.pop %v376
      %v408 = vrcp.pop %v378
      %v409 = vrcp.pop %v380
      %v410 = vrcp.pop %v382
      %v411 = vrcp.pop %v384
      %v412 = vrcp.pop %v386
      %v413 = vrcp.pop %v388
      %v414 = vrcp.pop %v390
      %v415 = vrcp.pop %v392
      %v416 = vrcp.pop %v394
      %v417 = vrcp.pop %v396
      %v418 = vrcp.pop %v398
      %v419 = vrcp.pop %v400
      %v420 = vrcp.pop %v402
      %v421 = vrcp.pop %v404
      %v422 = vrcp.pop %v406
      %v423 = vmul.f32 %v344, %v407
      %v424 = vmul.f32 %v346, %v408
      %v425 = vmul.f32 %v348, %v409
      %v426 = vmul.f32 %v350, %v410
      %v427 = vmul.f32 %v352, %v411
      %v428 = vmul.f32 %v354, %v412
      %v429 = vmul.f32 %v356, %v413
      %v430 = vmul.f32 %v358, %v414
      %v431 = vmul.f32 %v360, %v415
      %v432 = vmul.f32 %v362, %v416
      %v433 = vmul.f32 %v364, %v417
      %v434 = vmul.f32 %v366, %v418
      %v435 = vmul.f32 %v368, %v419
      %v436 = vmul.f32 %v370, %v420
      %v437 = vmul.f32 %v372, %v421
      %v438 = vmul.f32 %v374, %v422
      %v439 = vpack.c.bf16 %v424, %v423
      %v440 = vpack.c.bf16 %v426, %v425
      %v441 = vpack.c.bf16 %v428, %v427
      %v442 = vpack.c.bf16 %v430, %v429
      %v443 = vpack.c.bf16 %v432, %v431
      %v444 = vpack.c.bf16 %v434, %v433
      %v445 = vpack.c.bf16 %v436, %v435
      %v446 = vpack.c.bf16 %v438, %v437
      %v447 = vpack.c.bf16 %v122, %v119
      %v448 = vpack.c.bf16 %v128, %v125
      %v449 = vpack.c.bf16 %v134, %v131
      %v450 = vpack.c.bf16 %v140, %v137
      %v451 = vpack.c.bf16 %v146, %v143
      %v452 = vpack.c.bf16 %v152, %v149
      %v453 = vpack.c.bf16 %v158, %v155
      %v454 = vpack.c.bf16 %v164, %v161
      %455 = vmatpush.bf16.msra.mxu0 %v454
      %456 = vmatpush.bf16.msra.mxu0 %v453
      %457 = vmatpush.bf16.msra.mxu0 %v452
      %458 = vmatpush.bf16.msra.mxu0 %v451
      %459 = vmatpush.bf16.msra.mxu0 %v450
      %460 = vmatpush.bf16.msra.mxu0 %v449
      %461 = vmatpush.bf16.msra.mxu0 %v448
      %462 = vmatpush.bf16.msra.mxu0 %v447
      %463 = vmatmul.bf16.gmra.mxu0 %v439
      %v464 = vpop.f32.mrf.mxu0
      %v465 = vadd.f32 0.0, %v464
      %v466 = vpop.f32.mrf.mxu0
      %v467 = vadd.f32 0.0, %v466
      %468 = vmatmul.bf16.gmra.mxu0 %v440
      %v469 = vpop.f32.mrf.mxu0
      %v470 = vadd.f32 0.0, %v469
      %v471 = vpop.f32.mrf.mxu0
      %v472 = vadd.f32 0.0, %v471
      %473 = vmatmul.bf16.gmra.mxu0 %v441
      %v474 = vpop.f32.mrf.mxu0
      %v475 = vadd.f32 0.0, %v474
      %v476 = vpop.f32.mrf.mxu0
      %v477 = vadd.f32 0.0, %v476
      %478 = vmatmul.bf16.gmra.mxu0 %v442
      %v479 = vpop.f32.mrf.mxu0
      %v480 = vadd.f32 0.0, %v479
      %v481 = vpop.f32.mrf.mxu0
      %v482 = vadd.f32 0.0, %v481
      %483 = vmatmul.bf16.gmra.mxu0 %v443
      %v484 = vpop.f32.mrf.mxu0
      %v485 = vadd.f32 0.0, %v484
      %v486 = vpop.f32.mrf.mxu0
      %v487 = vadd.f32 0.0, %v486
      %488 = vmatmul.bf16.gmra.mxu0 %v444
      %v489 = vpop.f32.mrf.mxu0
      %v490 = vadd.f32 0.0, %v489
      %v491 = vpop.f32.mrf.mxu0
      %v492 = vadd.f32 0.0, %v491
      %493 = vmatmul.bf16.gmra.mxu0 %v445
      %v494 = vpop.f32.mrf.mxu0
      %v495 = vadd.f32 0.0, %v494
      %v496 = vpop.f32.mrf.mxu0
      %v497 = vadd.f32 0.0, %v496
      %498 = vmatmul.bf16.gmra.mxu0 %v446
      %v499 = vpop.f32.mrf.mxu0
      %v500 = vadd.f32 0.0, %v499
      %v501 = vpop.f32.mrf.mxu0
      %v502 = vadd.f32 0.0, %v501
      %503 = vdwg.mxu0
      %512 = vrot.lane.b32.xlu0 %v181, 64
      %v513 = vpop.permute.xlu0 %512
      %514 = vrot.lane.b32.xlu0 %v182, 64
      %v515 = vpop.permute.xlu0 %514
      %516 = vrot.lane.b32.xlu0 %v183, 64
      %v517 = vpop.permute.xlu0 %516
      %518 = vrot.lane.b32.xlu0 %v184, 64
      %v519 = vpop.permute.xlu0 %518
      %520 = vrot.lane.b32.xlu0 %v185, 64
      %v521 = vpop.permute.xlu0 %520
      %522 = vrot.lane.b32.xlu0 %v186, 64
      %v523 = vpop.permute.xlu0 %522
      %524 = vrot.lane.b32.xlu0 %v187, 64
      %v525 = vpop.permute.xlu0 %524
      %526 = vrot.lane.b32.xlu0 %v188, 64
      %v527 = vpop.permute.xlu0 %526
      %536 = vrot.lane.b32.xlu0 %v189, 64
      %v537 = vpop.permute.xlu0 %536
      %538 = vrot.lane.b32.xlu0 %v190, 64
      %v539 = vpop.permute.xlu0 %538
      %540 = vrot.lane.b32.xlu0 %v191, 64
      %v541 = vpop.permute.xlu0 %540
      %542 = vrot.lane.b32.xlu0 %v192, 64
      %v543 = vpop.permute.xlu0 %542
      %544 = vrot.lane.b32.xlu0 %v193, 64
      %v545 = vpop.permute.xlu0 %544
      %546 = vrot.lane.b32.xlu0 %v194, 64
      %v547 = vpop.permute.xlu0 %546
      %548 = vrot.lane.b32.xlu0 %v195, 64
      %v549 = vpop.permute.xlu0 %548
      %550 = vrot.lane.b32.xlu0 %v196, 64
      %v551 = vpop.permute.xlu0 %550
      %v553 = vsel %vm197, %v513, 0
      %v556 = vsel %vm197, %v515, 0
      %v559 = vsel %vm197, %v517, 0
      %v562 = vsel %vm197, %v519, 0
      %v565 = vsel %vm197, %v521, 0
      %v568 = vsel %vm197, %v523, 0
      %v571 = vsel %vm197, %v525, 0
      %v574 = vsel %vm197, %v527, 0
      %v577 = vsel %vm197, %v537, 0
      %v580 = vsel %vm197, %v539, 0
      %v583 = vsel %vm197, %v541, 0
      %v586 = vsel %vm197, %v543, 0
      %v589 = vsel %vm197, %v545, 0
      %v592 = vsel %vm197, %v547, 0
      %v595 = vsel %vm197, %v549, 0
      %v598 = vsel %vm197, %v551, 0
      %600 = vmatpush.bf16.xpose.msra.mxu0 %v598
      %601 = vmatpush.bf16.xpose.msra.mxu0 %v595
      %602 = vmatpush.bf16.xpose.msra.mxu0 %v592
      %603 = vmatpush.bf16.xpose.msra.mxu0 %v589
      %604 = vmatpush.bf16.xpose.msra.mxu0 %v586
      %605 = vmatpush.bf16.xpose.msra.mxu0 %v583
      %606 = vmatpush.bf16.xpose.msra.mxu0 %v580
      %607 = vmatpush.bf16.xpose.msra.mxu0 %v577
      %608 = vmatmul.bf16.gmra.mxu0 %v553
      %v609 = vpop.f32.mrf.mxu0
      %v610 = vadd.f32 0.0, %v609
      %v611 = vpop.f32.mrf.mxu0
      %v612 = vadd.f32 0.0, %v611
      %613 = vmatmul.bf16.gmra.mxu0 %v556
      %v614 = vpop.f32.mrf.mxu0
      %v615 = vadd.f32 0.0, %v614
      %v616 = vpop.f32.mrf.mxu0
      %v617 = vadd.f32 0.0, %v616
      %618 = vmatmul.bf16.gmra.mxu0 %v559
      %v619 = vpop.f32.mrf.mxu0
      %v620 = vadd.f32 0.0, %v619
      %v621 = vpop.f32.mrf.mxu0
      %v622 = vadd.f32 0.0, %v621
      %623 = vmatmul.bf16.gmra.mxu0 %v562
      %v624 = vpop.f32.mrf.mxu0
      %v625 = vadd.f32 0.0, %v624
      %v626 = vpop.f32.mrf.mxu0
      %v627 = vadd.f32 0.0, %v626
      %628 = vmatmul.bf16.gmra.mxu0 %v565
      %v629 = vpop.f32.mrf.mxu0
      %v630 = vadd.f32 0.0, %v629
      %v631 = vpop.f32.mrf.mxu0
      %v632 = vadd.f32 0.0, %v631
      %633 = vmatmul.bf16.gmra.mxu0 %v568
      %v634 = vpop.f32.mrf.mxu0
      %v635 = vadd.f32 0.0, %v634
      %v636 = vpop.f32.mrf.mxu0
      %v637 = vadd.f32 0.0, %v636
      %638 = vmatmul.bf16.gmra.mxu0 %v571
      %v639 = vpop.f32.mrf.mxu0
      %v640 = vadd.f32 0.0, %v639
      %v641 = vpop.f32.mrf.mxu0
      %v642 = vadd.f32 0.0, %v641
      %643 = vmatmul.bf16.gmra.mxu0 %v574
      %v644 = vpop.f32.mrf.mxu0
      %v645 = vadd.f32 0.0, %v644
      %v646 = vpop.f32.mrf.mxu0
      %v647 = vadd.f32 0.0, %v646
      %648 = vdwg.mxu0
      %649 = vmax.xlane.f32.xlu0 %v610
      %v650 = vpop.xlane.xlu0 %649
      %651 = vmax.xlane.f32.xlu0 %v612
      %v652 = vpop.xlane.xlu0 %651
      %653 = vmax.xlane.f32.xlu0 %v615
      %v654 = vpop.xlane.xlu0 %653
      %655 = vmax.xlane.f32.xlu0 %v617
      %v656 = vpop.xlane.xlu0 %655
      %657 = vmax.xlane.f32.xlu0 %v620
      %v658 = vpop.xlane.xlu0 %657
      %659 = vmax.xlane.f32.xlu0 %v622
      %v660 = vpop.xlane.xlu0 %659
      %661 = vmax.xlane.f32.xlu0 %v625
      %v662 = vpop.xlane.xlu0 %661
      %663 = vmax.xlane.f32.xlu0 %v627
      %v664 = vpop.xlane.xlu0 %663
      %665 = vmax.xlane.f32.xlu0 %v630
      %v666 = vpop.xlane.xlu0 %665
      %667 = vmax.xlane.f32.xlu0 %v632
      %v668 = vpop.xlane.xlu0 %667
      %669 = vmax.xlane.f32.xlu0 %v635
      %v670 = vpop.xlane.xlu0 %669
      %671 = vmax.xlane.f32.xlu0 %v637
      %v672 = vpop.xlane.xlu0 %671
      %673 = vmax.xlane.f32.xlu0 %v640
      %v674 = vpop.xlane.xlu0 %673
      %675 = vmax.xlane.f32.xlu0 %v642
      %v676 = vpop.xlane.xlu0 %675
      %677 = vmax.xlane.f32.xlu0 %v645
      %v678 = vpop.xlane.xlu0 %677
      %679 = vmax.xlane.f32.xlu0 %v647
      %v680 = vpop.xlane.xlu0 %679
      %v681 = vsub.f32 %v610, %v650
      %v682 = vsub.f32 %v612, %v652
      %v683 = vsub.f32 %v615, %v654
      %v684 = vsub.f32 %v617, %v656
      %v685 = vsub.f32 %v620, %v658
      %v686 = vsub.f32 %v622, %v660
      %v687 = vsub.f32 %v625, %v662
      %v688 = vsub.f32 %v627, %v664
      %v689 = vsub.f32 %v630, %v666
      %v690 = vsub.f32 %v632, %v668
      %v691 = vsub.f32 %v635, %v670
      %v692 = vsub.f32 %v637, %v672
      %v693 = vsub.f32 %v640, %v674
      %v694 = vsub.f32 %v642, %v676
      %v695 = vsub.f32 %v645, %v678
      %v696 = vsub.f32 %v647, %v680
      %v697 = vmul.f32 %v681, 1.442695
      %v698 = vpow.pop %v697
      %v699 = vmul.f32 %v682, 1.442695
      %v700 = vpow.pop %v699
      %v701 = vmul.f32 %v683, 1.442695
      %v702 = vpow.pop %v701
      %v703 = vmul.f32 %v684, 1.442695
      %v704 = vpow.pop %v703
      %v705 = vmul.f32 %v685, 1.442695
      %v706 = vpow.pop %v705
      %v707 = vmul.f32 %v686, 1.442695
      %v708 = vpow.pop %v707
      %v709 = vmul.f32 %v687, 1.442695
      %v710 = vpow.pop %v709
      %v711 = vmul.f32 %v688, 1.442695
      %v712 = vpow.pop %v711
      %v713 = vmul.f32 %v689, 1.442695
      %v714 = vpow.pop %v713
      %v715 = vmul.f32 %v690, 1.442695
      %v716 = vpow.pop %v715
      %v717 = vmul.f32 %v691, 1.442695
      %v718 = vpow.pop %v717
      %v719 = vmul.f32 %v692, 1.442695
      %v720 = vpow.pop %v719
      %v721 = vmul.f32 %v693, 1.442695
      %v722 = vpow.pop %v721
      %v723 = vmul.f32 %v694, 1.442695
      %v724 = vpow.pop %v723
      %v725 = vmul.f32 %v695, 1.442695
      %v726 = vpow.pop %v725
      %v727 = vmul.f32 %v696, 1.442695
      %v728 = vpow.pop %v727
      %729 = vadd.xlane.f32.xlu0 %v698
      %v730 = vpop.xlane.xlu0 %729
      %731 = vadd.xlane.f32.xlu0 %v700
      %v732 = vpop.xlane.xlu0 %731
      %733 = vadd.xlane.f32.xlu0 %v702
      %v734 = vpop.xlane.xlu0 %733
      %735 = vadd.xlane.f32.xlu0 %v704
      %v736 = vpop.xlane.xlu0 %735
      %737 = vadd.xlane.f32.xlu0 %v706
      %v738 = vpop.xlane.xlu0 %737
      %739 = vadd.xlane.f32.xlu0 %v708
      %v740 = vpop.xlane.xlu0 %739
      %741 = vadd.xlane.f32.xlu0 %v710
      %v742 = vpop.xlane.xlu0 %741
      %743 = vadd.xlane.f32.xlu0 %v712
      %v744 = vpop.xlane.xlu0 %743
      %745 = vadd.xlane.f32.xlu0 %v714
      %v746 = vpop.xlane.xlu0 %745
      %747 = vadd.xlane.f32.xlu0 %v716
      %v748 = vpop.xlane.xlu0 %747
      %749 = vadd.xlane.f32.xlu0 %v718
      %v750 = vpop.xlane.xlu0 %749
      %751 = vadd.xlane.f32.xlu0 %v720
      %v752 = vpop.xlane.xlu0 %751
      %753 = vadd.xlane.f32.xlu0 %v722
      %v754 = vpop.xlane.xlu0 %753
      %755 = vadd.xlane.f32.xlu0 %v724
      %v756 = vpop.xlane.xlu0 %755
      %757 = vadd.xlane.f32.xlu0 %v726
      %v758 = vpop.xlane.xlu0 %757
      %759 = vadd.xlane.f32.xlu0 %v728
      %v760 = vpop.xlane.xlu0 %759
      %v761 = vrcp.pop %v730
      %v762 = vrcp.pop %v732
      %v763 = vrcp.pop %v734
      %v764 = vrcp.pop %v736
      %v765 = vrcp.pop %v738
      %v766 = vrcp.pop %v740
      %v767 = vrcp.pop %v742
      %v768 = vrcp.pop %v744
      %v769 = vrcp.pop %v746
      %v770 = vrcp.pop %v748
      %v771 = vrcp.pop %v750
      %v772 = vrcp.pop %v752
      %v773 = vrcp.pop %v754
      %v774 = vrcp.pop %v756
      %v775 = vrcp.pop %v758
      %v776 = vrcp.pop %v760
      %v777 = vmul.f32 %v698, %v761
      %v778 = vmul.f32 %v700, %v762
      %v779 = vmul.f32 %v702, %v763
      %v780 = vmul.f32 %v704, %v764
      %v781 = vmul.f32 %v706, %v765
      %v782 = vmul.f32 %v708, %v766
      %v783 = vmul.f32 %v710, %v767
      %v784 = vmul.f32 %v712, %v768
      %v785 = vmul.f32 %v714, %v769
      %v786 = vmul.f32 %v716, %v770
      %v787 = vmul.f32 %v718, %v771
      %v788 = vmul.f32 %v720, %v772
      %v789 = vmul.f32 %v722, %v773
      %v790 = vmul.f32 %v724, %v774
      %v791 = vmul.f32 %v726, %v775
      %v792 = vmul.f32 %v728, %v776
      %v793 = vpack.c.bf16 %v778, %v777
      %v794 = vpack.c.bf16 %v780, %v779
      %v795 = vpack.c.bf16 %v782, %v781
      %v796 = vpack.c.bf16 %v784, %v783
      %v797 = vpack.c.bf16 %v786, %v785
      %v798 = vpack.c.bf16 %v788, %v787
      %v799 = vpack.c.bf16 %v790, %v789
      %v800 = vpack.c.bf16 %v792, %v791
      %809 = vrot.lane.b32.xlu0 %v447, 64
      %v810 = vpop.permute.xlu0 %809
      %811 = vrot.lane.b32.xlu0 %v448, 64
      %v812 = vpop.permute.xlu0 %811
      %813 = vrot.lane.b32.xlu0 %v449, 64
      %v814 = vpop.permute.xlu0 %813
      %815 = vrot.lane.b32.xlu0 %v450, 64
      %v816 = vpop.permute.xlu0 %815
      %817 = vrot.lane.b32.xlu0 %v451, 64
      %v818 = vpop.permute.xlu0 %817
      %819 = vrot.lane.b32.xlu0 %v452, 64
      %v820 = vpop.permute.xlu0 %819
      %821 = vrot.lane.b32.xlu0 %v453, 64
      %v822 = vpop.permute.xlu0 %821
      %823 = vrot.lane.b32.xlu0 %v454, 64
      %v824 = vpop.permute.xlu0 %823
      %833 = vmatpush.bf16.msra.mxu0 %v824
      %834 = vmatpush.bf16.msra.mxu0 %v822
      %835 = vmatpush.bf16.msra.mxu0 %v820
      %836 = vmatpush.bf16.msra.mxu0 %v818
      %837 = vmatpush.bf16.msra.mxu0 %v816
      %838 = vmatpush.bf16.msra.mxu0 %v814
      %839 = vmatpush.bf16.msra.mxu0 %v812
      %840 = vmatpush.bf16.msra.mxu0 %v810
      %841 = vmatmul.bf16.gmra.mxu0 %v793
      %v842 = vpop.f32.mrf.mxu0
      %v843 = vadd.f32 0.0, %v842
      %v844 = vpop.f32.mrf.mxu0
      %v845 = vadd.f32 0.0, %v844
      %846 = vmatmul.bf16.gmra.mxu0 %v794
      %v847 = vpop.f32.mrf.mxu0
      %v848 = vadd.f32 0.0, %v847
      %v849 = vpop.f32.mrf.mxu0
      %v850 = vadd.f32 0.0, %v849
      %851 = vmatmul.bf16.gmra.mxu0 %v795
      %v852 = vpop.f32.mrf.mxu0
      %v853 = vadd.f32 0.0, %v852
      %v854 = vpop.f32.mrf.mxu0
      %v855 = vadd.f32 0.0, %v854
      %856 = vmatmul.bf16.gmra.mxu0 %v796
      %v857 = vpop.f32.mrf.mxu0
      %v858 = vadd.f32 0.0, %v857
      %v859 = vpop.f32.mrf.mxu0
      %v860 = vadd.f32 0.0, %v859
      %861 = vmatmul.bf16.gmra.mxu0 %v797
      %v862 = vpop.f32.mrf.mxu0
      %v863 = vadd.f32 0.0, %v862
      %v864 = vpop.f32.mrf.mxu0
      %v865 = vadd.f32 0.0, %v864
      %866 = vmatmul.bf16.gmra.mxu0 %v798
      %v867 = vpop.f32.mrf.mxu0
      %v868 = vadd.f32 0.0, %v867
      %v869 = vpop.f32.mrf.mxu0
      %v870 = vadd.f32 0.0, %v869
      %871 = vmatmul.bf16.gmra.mxu0 %v799
      %v872 = vpop.f32.mrf.mxu0
      %v873 = vadd.f32 0.0, %v872
      %v874 = vpop.f32.mrf.mxu0
      %v875 = vadd.f32 0.0, %v874
      %876 = vmatmul.bf16.gmra.mxu0 %v800
      %v877 = vpop.f32.mrf.mxu0
      %v878 = vadd.f32 0.0, %v877
      %v879 = vpop.f32.mrf.mxu0
      %v880 = vadd.f32 0.0, %v879
      %881 = vdwg.mxu0
      %898 = vrot.lane.b32.xlu0 %v843, 64
      %v899 = vpop.permute.xlu0 %898
      %900 = vrot.lane.b32.xlu0 %v845, 64
      %v901 = vpop.permute.xlu0 %900
      %902 = vrot.lane.b32.xlu0 %v848, 64
      %v903 = vpop.permute.xlu0 %902
      %904 = vrot.lane.b32.xlu0 %v850, 64
      %v905 = vpop.permute.xlu0 %904
      %906 = vrot.lane.b32.xlu0 %v853, 64
      %v907 = vpop.permute.xlu0 %906
      %908 = vrot.lane.b32.xlu0 %v855, 64
      %v909 = vpop.permute.xlu0 %908
      %910 = vrot.lane.b32.xlu0 %v858, 64
      %v911 = vpop.permute.xlu0 %910
      %912 = vrot.lane.b32.xlu0 %v860, 64
      %v913 = vpop.permute.xlu0 %912
      %914 = vrot.lane.b32.xlu0 %v863, 64
      %v915 = vpop.permute.xlu0 %914
      %916 = vrot.lane.b32.xlu0 %v865, 64
      %v917 = vpop.permute.xlu0 %916
      %918 = vrot.lane.b32.xlu0 %v868, 64
      %v919 = vpop.permute.xlu0 %918
      %920 = vrot.lane.b32.xlu0 %v870, 64
      %v921 = vpop.permute.xlu0 %920
      %922 = vrot.lane.b32.xlu0 %v873, 64
      %v923 = vpop.permute.xlu0 %922
      %924 = vrot.lane.b32.xlu0 %v875, 64
      %v925 = vpop.permute.xlu0 %924
      %926 = vrot.lane.b32.xlu0 %v878, 64
      %v927 = vpop.permute.xlu0 %926
      %928 = vrot.lane.b32.xlu0 %v880, 64
      %v929 = vpop.permute.xlu0 %928
      %v946 = vsel %vm197, %v465, %v899
      %v947 = vsel %vm197, %v467, %v901
      %v948 = vsel %vm197, %v470, %v903
      %v949 = vsel %vm197, %v472, %v905
      %v950 = vsel %vm197, %v475, %v907
      %v951 = vsel %vm197, %v477, %v909
      %v952 = vsel %vm197, %v480, %v911
      %v953 = vsel %vm197, %v482, %v913
      %v954 = vsel %vm197, %v485, %v915
      %v955 = vsel %vm197, %v487, %v917
      %v956 = vsel %vm197, %v490, %v919
      %v957 = vsel %vm197, %v492, %v921
      %v958 = vsel %vm197, %v495, %v923
      %v959 = vsel %vm197, %v497, %v925
      %v960 = vsel %vm197, %v500, %v927
      %v961 = vsel %vm197, %v502, %v929
      %962 = vst [vmem:[%s116] sm:$0xff] %v946
      %963 = vst [vmem:[%s116 + $0x8] sm:$0xff] %v947
      %964 = vst [vmem:[%s116 + $0x10] sm:$0xff] %v948
      %965 = vst [vmem:[%s116 + $0x18] sm:$0xff] %v949
      %966 = vst [vmem:[%s116 + $0x20] sm:$0xff] %v950
      %967 = vst [vmem:[%s116 + $0x28] sm:$0xff] %v951
      %968 = vst [vmem:[%s116 + $0x30] sm:$0xff] %v952
      %969 = vst [vmem:[%s116 + $0x38] sm:$0xff] %v953
      %970 = vst [vmem:[%s116 + $0x40] sm:$0xff] %v954
      %971 = vst [vmem:[%s116 + $0x48] sm:$0xff] %v955
      %972 = vst [vmem:[%s116 + $0x50] sm:$0xff] %v956
      %973 = vst [vmem:[%s116 + $0x58] sm:$0xff] %v957
      %974 = vst [vmem:[%s116 + $0x60] sm:$0xff] %v958
      %975 = vst [vmem:[%s116 + $0x68] sm:$0xff] %v959
      %976 = vst [vmem:[%s116 + $0x70] sm:$0xff] %v960
      %977 = vst [vmem:[%s116 + $0x78] sm:$0xff] %v961
      %p978 = scmp.lt.s32.totalorder %s12, 1
      %s979 = scalar_select %p978, %s12, 1
      %s980 = smul.addr %s979, 16
      %s981 = smul.addr %s980, 8
      %s982 = scalar_lea.vmem %s1, %s981
      // Predicated region
      $region25: #{elastic_mha_forward.4} parent=23 // pred_check
        %p983 = pneg %p56
      $region26: #{elastic_mha_forward.4} parent=23 // pred_check_branch
        %985 = sbr.rel (%p983) target = $region28
      $region27: #{elastic_mha_forward.4} parent=23 // pred_region
        _
      $region28: #{elastic_mha_forward.4} parent=23 // pred_fallthru
        _
    $region24: #{elastic_mha_forward.4} parent=5 // pred_fallthru
      _
    %p986 = scmp.le.s32.totalorder 2, %s7
    // Predicated region
    $region29: #{elastic_mha_forward.4} parent=5 // pred_check
      %p987 = pneg %p986
    $region30: #{elastic_mha_forward.4} parent=5 // pred_check_branch
      %989 = sbr.rel (%p987) target = $region32
    $region31: #{elastic_mha_forward.4} parent=5 // pred_region
      %s990 = ssub.s32 %s7, 2
      // Predicated region
      $region33: #{elastic_mha_forward.4} parent=31 // pred_check
        %p991 = pneg %p62
      $region34: #{elastic_mha_forward.4} parent=31 // pred_check_branch
        %993 = sbr.rel (%p991) target = $region36
      $region35: #{elastic_mha_forward.4} parent=31 // pred_region
        %p994 = scmp.lt.s32.totalorder %s13, 1
        %s995 = scalar_select %p994, %s13, 1
        %s996 = smul.addr %s995, 16
        %s997 = smul.addr %s996, 8
        %s998 = scalar_lea.vmem %s1, %s997
      $region36: #{elastic_mha_forward.4} parent=31 // pred_fallthru
        _
    $region32: #{elastic_mha_forward.4} parent=5 // pred_fallthru
      _
  $region6: #{elastic_mha_forward.4} parent=0 // loop_footer
    %s11 = sadd.s32 1, %s7
  $region7: #{elastic_mha_forward.4} parent=0 // loop_footer_branch
    %6 = sbr.rel target = $region3
  $region8: #{elastic_mha_forward.4} parent=0 // loop_exit
    _

</llo_original>
